<compile_context>
chip_gen: v7x
topology: tpu7x:2x2x1
jax: 0.10.0
libtpu: 0.0.40
codegen_flags: <defaults>
</compile_context>

<pallas_src>
import functools

import jax
import jax.numpy as jnp
import numpy as np
from jax import lax
from jax.experimental import pallas as pl
from jax.experimental.pallas import tpu as pltpu

LANE = 128      # lane-dense padding for every output-channel dimension
K1_PAD = 80     # conv1 im2col reduction dim: 75 real -> 80 (8-aligned, zeros)
C2_PAD = 32     # conv1 out-channels inside conv2's K: 28 real -> 32 (zeros)


def _round_up(x, m):
    return (x + m - 1) // m * m


# ------------------------------ fused Pallas kernel ------------------------- #

def fused_forward_kernel(pat_ref, w1_ref, b1_ref, w2_ref, b2_ref,
                         w3_ref, b3_ref, wf_ref, bf_ref, out_ref,
                         *, n_batch, rows_per_tap):
    """Whole ConvModel forward on VMEM-resident data.

    pat_ref : (16*P, 80) conv1 im2col patches over the 400 distinct conv1
              positions per image; rows ordered (pool1 tap ti,tj | i,j | n),
              where conv1 position (y,x) = (4i+ti, 4j+tj), i,j in 0..4.
    w*_ref  : compact zero-padded weights (see wrapper).
    out_ref : (N, 128) padded log-probs (first 10 lanes are real).
    """
    N = n_batch
    P = rows_per_tap                      # rows per pool1-tap block (8-aligned)

    # conv1: ONE matmul over all 16*P rows -> single MXU weight push.
    raw = jnp.dot(pat_ref[...], w1_ref[...], preferred_element_type=jnp.float32)

    # pool1 fused with conv1: running max over the 16 pool-window taps.
    # Bias + ReLU hoisted out of the max (bias is per-tap constant, monotone).
    m = raw[0:P]
    for t in range(1, 16):
        m = jnp.maximum(m, raw[t * P:(t + 1) * P])
    p1 = jnp.maximum(m + b1_ref[...], 0.0)        # (P, 128), rows (i, j, n)

    # conv2 as ONE K=16*32 matmul over the 4 output positions that survive
    # floor-mode pool2 (the 2x2 window of conv2's 3x3 output).
    tops, bots = [], []
    for di in range(4):
        for dj in range(4):
            a = (di * 5 + dj) * N          # rows (i=di,   j=dj..dj+1, all n)
            b = ((di + 1) * 5 + dj) * N    # rows (i=di+1, j=dj..dj+1, all n)
            tops.append(p1[a:a + 2 * N, 0:C2_PAD])
            bots.append(p1[b:b + 2 * N, 0:C2_PAD])
    lhs2 = jnp.concatenate(
        [jnp.concatenate(tops, axis=1), jnp.concatenate(bots, axis=1)], axis=0)
    # lhs2: (4N, 512); rows ordered (oh, ow, n), lanes ordered (tap, channel).
    h2 = jnp.maximum(
        jnp.dot(lhs2, w2_ref[...], preferred_element_type=jnp.float32)
        + b2_ref[...], 0.0)                        # (4N, 128)

    # pool2: elementwise max over the 4 positions per image.
    p2 = h2[0:N]
    for pos in range(1, 4):
        p2 = jnp.maximum(p2, h2[pos * N:(pos + 1) * N])

    # conv3 (1x1) + ReLU.  (pool3 = MaxPool2d(1,1) is the identity.)
    h3 = jnp.maximum(
        jnp.dot(p2, w3_ref[...], preferred_element_type=jnp.float32)
        + b3_ref[...], 0.0)

    # fc + log_softmax; padded logit lanes carry bias -1e30 so they vanish.
    logits = (jnp.dot(h3, wf_ref[...], preferred_element_type=jnp.float32)
              + bf_ref[...])
    mx = jnp.max(logits, axis=-1, keepdims=True)
    s = logits - mx
    lse = jnp.log(jnp.sum(jnp.exp(s), axis=-1, keepdims=True))
    out_ref[...] = (s - lse).astype(out_ref.dtype)


def run_fused_forward(pat, w1, b1, w2, b2, w3, b3, wf, bf, n_batch, rows_per_tap):
    kern = functools.partial(fused_forward_kernel, n_batch=n_batch,
                             rows_per_tap=rows_per_tap)

    def full(shape):
        return pl.BlockSpec(shape, lambda i, _nd=len(shape): (0,) * _nd)

    return pl.pallas_call(
        kern,
        out_shape=jax.ShapeDtypeStruct((n_batch, LANE), jnp.float32),
        grid=(1,),
        in_specs=[
            full(pat.shape),                       # conv1 patches (16*P, 80)
            full(w1.shape), full(b1.shape),        # (80, 128), (1, 128)
            full(w2.shape), full(b2.shape),        # (512, 128), (1, 128)
            full(w3.shape), full(b3.shape),        # (128, 128), (1, 128)
            full(wf.shape), full(bf.shape),        # (128, 128), (1, 128)
        ],
        out_specs=full((n_batch, LANE)),
        compiler_params=pltpu.CompilerParams(
            dimension_semantics=("arbitrary",),
            vmem_limit_bytes=32 * 1024 * 1024),
    )(pat, w1, b1, w2, b2, w3, b3, wf, bf)


# --------------------------------- JAX glue --------------------------------- #

def _pad2(a, rows, cols):
    a = a.astype(jnp.float32)
    return jnp.pad(a, ((0, rows - a.shape[0]), (0, cols - a.shape[1])))


def _pad_bias(b, cols):
    return jnp.pad(b.astype(jnp.float32), (0, cols - b.shape[0])).reshape(1, cols)


def conv_model_forward(x_nchw, p):
    """Pallas implementation of ConvModel.forward.  Input NCHW, output (N, 10)."""
    N, Cin, H, W = x_nchw.shape
    assert (H, W) == (28, 28), "architecture requires 28x28 inputs (1x1 before fc)"
    c1, c2 = p["w1"].shape[-1], p["w2"].shape[-1]
    c3, cf = p["w3"].shape[-1], p["wf"].shape[-1]
    k1 = 25 * Cin
    assert k1 <= K1_PAD and c1 <= C2_PAD and max(c1, c2, c3, cf) <= LANE

    x = jnp.transpose(x_nchw, (0, 2, 3, 1)).astype(jnp.float32)   # NCHW -> NHWC

    # conv1 im2col over ONLY the 400 distinct output positions (20x20) that
    # feed the surviving tail: 25 static shifted slices + concat (no gather).
    cols = [x[:, dy:dy + 20, dx:dx + 20, :] for dy in range(5) for dx in range(5)]
    pat = jnp.concatenate(cols, axis=-1)            # (N,20,20,75), feat=(dy,dx,c)
    # Reorder rows to (pool tap ti,tj | i,j | n): conv1 pos (y,x)=(4i+ti, 4j+tj).
    pat = pat.reshape(N, 5, 4, 5, 4, k1)            # (n, i, ti, j, tj, feat)
    pat = jnp.transpose(pat, (2, 4, 1, 3, 0, 5))    # (ti, tj, i, j, n, feat)
    pat = pat.reshape(16, 25 * N, k1)
    P = _round_up(25 * N, 8)
    pat = jnp.pad(pat, ((0, 0), (0, P - 25 * N), (0, K1_PAD - k1)))  # explicit 0s
    pat = pat.reshape(16 * P, K1_PAD)

    # Compact, explicitly zero-padded weights (trimmed K dims, lane-dense out).
    w1 = _pad2(p["w1"].reshape(k1, c1), K1_PAD, LANE)
    b1 = _pad_bias(p["b1"], LANE)
    w2 = (jnp.zeros((16, C2_PAD, LANE), jnp.float32)
          .at[:, :c1, :c2].set(p["w2"].reshape(16, c1, c2).astype(jnp.float32))
          .reshape(16 * C2_PAD, LANE))
    b2 = _pad_bias(p["b2"], LANE)
    w3 = _pad2(p["w3"].reshape(c2, c3), LANE, LANE)
    b3 = _pad_bias(p["b3"], LANE)
    wf = _pad2(p["wf"], LANE, LANE)
    bf = jnp.full((1, LANE), -1e30, jnp.float32).at[0, :cf].set(
        p["bf"].astype(jnp.float32))

    out = run_fused_forward(pat, w1, b1, w2, b2, w3, b3, wf, bf, N, P)
    return out[:, :cf]


# ------------------------------ pure-JAX reference --------------------------- #

def reference_forward(x_nchw, p):
    x = jnp.transpose(x_nchw, (0, 2, 3, 1))

    def conv_relu(x, w, b):
        y = lax.conv_general_dilated(
            x, w, (1, 1), "VALID", dimension_numbers=("NHWC", "HWIO", "NHWC"))
        return jnp.maximum(y + b, 0.0)

    def pool(x, k):
        return lax.reduce_window(x, -jnp.inf, lax.max,
                                 (1, k, k, 1), (1, k, k, 1), "VALID")

    x = pool(conv_relu(x, p["w1"], p["b1"]), 4)
    x = pool(conv_relu(x, p["w2"], p["b2"]), 2)
    x = conv_relu(x, p["w3"], p["b3"])
    x = x.reshape(x.shape[0], -1)
    logits = x @ p["wf"] + p["bf"]
    return jax.nn.log_softmax(logits, axis=1)


# ------------------------------------ main ----------------------------------- #

if __name__ == "__main__":
    key = jax.random.PRNGKey(0)
    keys = jax.random.split(key, 6)

    # Module-consistent shapes: spatial must reduce to 1x1 before fc_1.
    N, Cin, H, W = 2, 3, 28, 28
    x = jax.random.normal(keys[0], (N, Cin, H, W), jnp.float32)

    def init_conv(k, kh, kw, cin, cout):
        kw_, kb_ = jax.random.split(k)
        w = 0.1 * jax.random.normal(kw_, (kh, kw, cin, cout), jnp.float32)
        b = 0.1 * jax.random.normal(kb_, (cout,), jnp.float32)
        return w, b

    w1, b1 = init_conv(keys[1], 5, 5, Cin, 28)
    w2, b2 = init_conv(keys[2], 4, 4, 28, 56)
    w3, b3 = init_conv(keys[3], 1, 1, 56, 112)
    wf = 0.1 * jax.random.normal(keys[4], (112, 10), jnp.float32)
    bf = 0.1 * jax.random.normal(keys[5], (10,), jnp.float32)

    params = {"w1": w1, "b1": b1, "w2": w2, "b2": b2,
              "w3": w3, "b3": b3, "wf": wf, "bf": bf}

    fwd = jax.jit(conv_model_forward)
    out = jax.block_until_ready(fwd(x, params))
    assert out.shape == (N, 10)

    ref = jax.block_until_ready(reference_forward(x, params))
    np.testing.assert_allclose(np.asarray(out), np.asarray(ref),
                               rtol=2e-4, atol=2e-4)

    print("KERNEL_OK")
</pallas_src>

<mosaic_0001>
module attributes {stable_mosaic.version = 11 : i64} {
  func.func @fused_forward_kernel(%arg0: i32, %arg1: memref<896x80xf32, #tpu.memory_space<vmem>>, %arg2: memref<80x128xf32, #tpu.memory_space<vmem>>, %arg3: memref<1x128xf32, #tpu.memory_space<vmem>>, %arg4: memref<512x128xf32, #tpu.memory_space<vmem>>, %arg5: memref<1x128xf32, #tpu.memory_space<vmem>>, %arg6: memref<128x128xf32, #tpu.memory_space<vmem>>, %arg7: memref<1x128xf32, #tpu.memory_space<vmem>>, %arg8: memref<128x128xf32, #tpu.memory_space<vmem>>, %arg9: memref<1x128xf32, #tpu.memory_space<vmem>>, %arg10: memref<2x128xf32, #tpu.memory_space<vmem>>) attributes {dimension_semantics = [#tpu.dimension_semantics<arbitrary>], iteration_bounds = array<i64: 1>, scalar_prefetch = 0 : i64, scratch_operands = 0 : i64, tpu.core_type = #tpu.core_type<tc>, window_params = [{pipeline_mode = #tpu.pipeline_mode<synchronous>, transform_indices = @transform_0, window_bounds = array<i64: 896, 80>}, {pipeline_mode = #tpu.pipeline_mode<synchronous>, transform_indices = @transform_1, window_bounds = array<i64: 80, 128>}, {pipeline_mode = #tpu.pipeline_mode<synchronous>, transform_indices = @transform_2, window_bounds = array<i64: 1, 128>}, {pipeline_mode = #tpu.pipeline_mode<synchronous>, transform_indices = @transform_3, window_bounds = array<i64: 512, 128>}, {pipeline_mode = #tpu.pipeline_mode<synchronous>, transform_indices = @transform_4, window_bounds = array<i64: 1, 128>}, {pipeline_mode = #tpu.pipeline_mode<synchronous>, transform_indices = @transform_5, window_bounds = array<i64: 128, 128>}, {pipeline_mode = #tpu.pipeline_mode<synchronous>, transform_indices = @transform_6, window_bounds = array<i64: 1, 128>}, {pipeline_mode = #tpu.pipeline_mode<synchronous>, transform_indices = @transform_7, window_bounds = array<i64: 128, 128>}, {pipeline_mode = #tpu.pipeline_mode<synchronous>, transform_indices = @transform_8, window_bounds = array<i64: 1, 128>}, {pipeline_mode = #tpu.pipeline_mode<synchronous>, transform_indices = @transform_9, window_bounds = array<i64: 2, 128>}]} {
    %c0 = arith.constant 0 : index
    %c0_0 = arith.constant 0 : index
    %0 = vector.load %arg1[%c0, %c0_0] : memref<896x80xf32, #tpu.memory_space<vmem>>, vector<896x80xf32>
    %c0_1 = arith.constant 0 : index
    %c0_2 = arith.constant 0 : index
    %1 = vector.load %arg2[%c0_1, %c0_2] : memref<80x128xf32, #tpu.memory_space<vmem>>, vector<80x128xf32>
    %cst = arith.constant dense<0.000000e+00> : vector<896x128xf32>
    %2 = tpu.matmul %0, %1, %cst {dimension_numbers = #tpu.dot_dimension_numbers<[1], [0], [0], [1], [0, 0, 1, 1], [], []>} : vector<896x80xf32>, vector<80x128xf32>, vector<896x128xf32> -> vector<896x128xf32>
    %3 = vector.extract_strided_slice %2 {offsets = [0, 0], sizes = [56, 128], strides = [1, 1]} : vector<896x128xf32> to vector<56x128xf32>
    %4 = vector.extract_strided_slice %2 {offsets = [56, 0], sizes = [56, 128], strides = [1, 1]} : vector<896x128xf32> to vector<56x128xf32>
    %5 = arith.maximumf %3, %4 : vector<56x128xf32>
    %6 = vector.extract_strided_slice %2 {offsets = [112, 0], sizes = [56, 128], strides = [1, 1]} : vector<896x128xf32> to vector<56x128xf32>
    %7 = arith.maximumf %5, %6 : vector<56x128xf32>
    %8 = vector.extract_strided_slice %2 {offsets = [168, 0], sizes = [56, 128], strides = [1, 1]} : vector<896x128xf32> to vector<56x128xf32>
    %9 = arith.maximumf %7, %8 : vector<56x128xf32>
    %10 = vector.extract_strided_slice %2 {offsets = [224, 0], sizes = [56, 128], strides = [1, 1]} : vector<896x128xf32> to vector<56x128xf32>
    %11 = arith.maximumf %9, %10 : vector<56x128xf32>
    %12 = vector.extract_strided_slice %2 {offsets = [280, 0], sizes = [56, 128], strides = [1, 1]} : vector<896x128xf32> to vector<56x128xf32>
    %13 = arith.maximumf %11, %12 : vector<56x128xf32>
    %14 = vector.extract_strided_slice %2 {offsets = [336, 0], sizes = [56, 128], strides = [1, 1]} : vector<896x128xf32> to vector<56x128xf32>
    %15 = arith.maximumf %13, %14 : vector<56x128xf32>
    %16 = vector.extract_strided_slice %2 {offsets = [392, 0], sizes = [56, 128], strides = [1, 1]} : vector<896x128xf32> to vector<56x128xf32>
    %17 = arith.maximumf %15, %16 : vector<56x128xf32>
    %18 = vector.extract_strided_slice %2 {offsets = [448, 0], sizes = [56, 128], strides = [1, 1]} : vector<896x128xf32> to vector<56x128xf32>
    %19 = arith.maximumf %17, %18 : vector<56x128xf32>
    %20 = vector.extract_strided_slice %2 {offsets = [504, 0], sizes = [56, 128], strides = [1, 1]} : vector<896x128xf32> to vector<56x128xf32>
    %21 = arith.maximumf %19, %20 : vector<56x128xf32>
    %22 = vector.extract_strided_slice %2 {offsets = [560, 0], sizes = [56, 128], strides = [1, 1]} : vector<896x128xf32> to vector<56x128xf32>
    %23 = arith.maximumf %21, %22 : vector<56x128xf32>
    %24 = vector.extract_strided_slice %2 {offsets = [616, 0], sizes = [56, 128], strides = [1, 1]} : vector<896x128xf32> to vector<56x128xf32>
    %25 = arith.maximumf %23, %24 : vector<56x128xf32>
    %26 = vector.extract_strided_slice %2 {offsets = [672, 0], sizes = [56, 128], strides = [1, 1]} : vector<896x128xf32> to vector<56x128xf32>
    %27 = arith.maximumf %25, %26 : vector<56x128xf32>
    %28 = vector.extract_strided_slice %2 {offsets = [728, 0], sizes = [56, 128], strides = [1, 1]} : vector<896x128xf32> to vector<56x128xf32>
    %29 = arith.maximumf %27, %28 : vector<56x128xf32>
    %30 = vector.extract_strided_slice %2 {offsets = [784, 0], sizes = [56, 128], strides = [1, 1]} : vector<896x128xf32> to vector<56x128xf32>
    %31 = arith.maximumf %29, %30 : vector<56x128xf32>
    %32 = vector.extract_strided_slice %2 {offsets = [840, 0], sizes = [56, 128], strides = [1, 1]} : vector<896x128xf32> to vector<56x128xf32>
    %33 = arith.maximumf %31, %32 : vector<56x128xf32>
    %c0_3 = arith.constant 0 : index
    %c0_4 = arith.constant 0 : index
    %34 = vector.load %arg3[%c0_3, %c0_4] : memref<1x128xf32, #tpu.memory_space<vmem>>, vector<1x128xf32>
    %35 = vector.broadcast %34 : vector<1x128xf32> to vector<56x128xf32>
    %36 = arith.addf %33, %35 : vector<56x128xf32>
    %cst_5 = arith.constant 0.000000e+00 : f32
    %37 = vector.broadcast %cst_5 : f32 to vector<56x128xf32>
    %38 = arith.maximumf %36, %37 : vector<56x128xf32>
    %39 = vector.extract_strided_slice %38 {offsets = [0, 0], sizes = [4, 32], strides = [1, 1]} : vector<56x128xf32> to vector<4x32xf32>
    %40 = vector.extract_strided_slice %38 {offsets = [10, 0], sizes = [4, 32], strides = [1, 1]} : vector<56x128xf32> to vector<4x32xf32>
    %41 = vector.extract_strided_slice %38 {offsets = [2, 0], sizes = [4, 32], strides = [1, 1]} : vector<56x128xf32> to vector<4x32xf32>
    %42 = vector.extract_strided_slice %38 {offsets = [12, 0], sizes = [4, 32], strides = [1, 1]} : vector<56x128xf32> to vector<4x32xf32>
    %43 = vector.extract_strided_slice %38 {offsets = [4, 0], sizes = [4, 32], strides = [1, 1]} : vector<56x128xf32> to vector<4x32xf32>
    %44 = vector.extract_strided_slice %38 {offsets = [14, 0], sizes = [4, 32], strides = [1, 1]} : vector<56x128xf32> to vector<4x32xf32>
    %45 = vector.extract_strided_slice %38 {offsets = [6, 0], sizes = [4, 32], strides = [1, 1]} : vector<56x128xf32> to vector<4x32xf32>
    %46 = vector.extract_strided_slice %38 {offsets = [16, 0], sizes = [4, 32], strides = [1, 1]} : vector<56x128xf32> to vector<4x32xf32>
    %47 = vector.extract_strided_slice %38 {offsets = [10, 0], sizes = [4, 32], strides = [1, 1]} : vector<56x128xf32> to vector<4x32xf32>
    %48 = vector.extract_strided_slice %38 {offsets = [20, 0], sizes = [4, 32], strides = [1, 1]} : vector<56x128xf32> to vector<4x32xf32>
    %49 = vector.extract_strided_slice %38 {offsets = [12, 0], sizes = [4, 32], strides = [1, 1]} : vector<56x128xf32> to vector<4x32xf32>
    %50 = vector.extract_strided_slice %38 {offsets = [22, 0], sizes = [4, 32], strides = [1, 1]} : vector<56x128xf32> to vector<4x32xf32>
    %51 = vector.extract_strided_slice %38 {offsets = [14, 0], sizes = [4, 32], strides = [1, 1]} : vector<56x128xf32> to vector<4x32xf32>
    %52 = vector.extract_strided_slice %38 {offsets = [24, 0], sizes = [4, 32], strides = [1, 1]} : vector<56x128xf32> to vector<4x32xf32>
    %53 = vector.extract_strided_slice %38 {offsets = [16, 0], sizes = [4, 32], strides = [1, 1]} : vector<56x128xf32> to vector<4x32xf32>
    %54 = vector.extract_strided_slice %38 {offsets = [26, 0], sizes = [4, 32], strides = [1, 1]} : vector<56x128xf32> to vector<4x32xf32>
    %55 = vector.extract_strided_slice %38 {offsets = [20, 0], sizes = [4, 32], strides = [1, 1]} : vector<56x128xf32> to vector<4x32xf32>
    %56 = vector.extract_strided_slice %38 {offsets = [30, 0], sizes = [4, 32], strides = [1, 1]} : vector<56x128xf32> to vector<4x32xf32>
    %57 = vector.extract_strided_slice %38 {offsets = [22, 0], sizes = [4, 32], strides = [1, 1]} : vector<56x128xf32> to vector<4x32xf32>
    %58 = vector.extract_strided_slice %38 {offsets = [32, 0], sizes = [4, 32], strides = [1, 1]} : vector<56x128xf32> to vector<4x32xf32>
    %59 = vector.extract_strided_slice %38 {offsets = [24, 0], sizes = [4, 32], strides = [1, 1]} : vector<56x128xf32> to vector<4x32xf32>
    %60 = vector.extract_strided_slice %38 {offsets = [34, 0], sizes = [4, 32], strides = [1, 1]} : vector<56x128xf32> to vector<4x32xf32>
    %61 = vector.extract_strided_slice %38 {offsets = [26, 0], sizes = [4, 32], strides = [1, 1]} : vector<56x128xf32> to vector<4x32xf32>
    %62 = vector.extract_strided_slice %38 {offsets = [36, 0], sizes = [4, 32], strides = [1, 1]} : vector<56x128xf32> to vector<4x32xf32>
    %63 = vector.extract_strided_slice %38 {offsets = [30, 0], sizes = [4, 32], strides = [1, 1]} : vector<56x128xf32> to vector<4x32xf32>
    %64 = vector.extract_strided_slice %38 {offsets = [40, 0], sizes = [4, 32], strides = [1, 1]} : vector<56x128xf32> to vector<4x32xf32>
    %65 = vector.extract_strided_slice %38 {offsets = [32, 0], sizes = [4, 32], strides = [1, 1]} : vector<56x128xf32> to vector<4x32xf32>
    %66 = vector.extract_strided_slice %38 {offsets = [42, 0], sizes = [4, 32], strides = [1, 1]} : vector<56x128xf32> to vector<4x32xf32>
    %67 = vector.extract_strided_slice %38 {offsets = [34, 0], sizes = [4, 32], strides = [1, 1]} : vector<56x128xf32> to vector<4x32xf32>
    %68 = vector.extract_strided_slice %38 {offsets = [44, 0], sizes = [4, 32], strides = [1, 1]} : vector<56x128xf32> to vector<4x32xf32>
    %69 = vector.extract_strided_slice %38 {offsets = [36, 0], sizes = [4, 32], strides = [1, 1]} : vector<56x128xf32> to vector<4x32xf32>
    %70 = vector.extract_strided_slice %38 {offsets = [46, 0], sizes = [4, 32], strides = [1, 1]} : vector<56x128xf32> to vector<4x32xf32>
    %71 = tpu.concatenate %39, %41, %43, %45, %47, %49, %51, %53, %55, %57, %59, %61, %63, %65, %67, %69 in 1 : vector<4x32xf32>, vector<4x32xf32>, vector<4x32xf32>, vector<4x32xf32>, vector<4x32xf32>, vector<4x32xf32>, vector<4x32xf32>, vector<4x32xf32>, vector<4x32xf32>, vector<4x32xf32>, vector<4x32xf32>, vector<4x32xf32>, vector<4x32xf32>, vector<4x32xf32>, vector<4x32xf32>, vector<4x32xf32> -> vector<4x512xf32>
    %72 = tpu.concatenate %40, %42, %44, %46, %48, %50, %52, %54, %56, %58, %60, %62, %64, %66, %68, %70 in 1 : vector<4x32xf32>, vector<4x32xf32>, vector<4x32xf32>, vector<4x32xf32>, vector<4x32xf32>, vector<4x32xf32>, vector<4x32xf32>, vector<4x32xf32>, vector<4x32xf32>, vector<4x32xf32>, vector<4x32xf32>, vector<4x32xf32>, vector<4x32xf32>, vector<4x32xf32>, vector<4x32xf32>, vector<4x32xf32> -> vector<4x512xf32>
    %73 = tpu.concatenate %71, %72 in 0 : vector<4x512xf32>, vector<4x512xf32> -> vector<8x512xf32>
    %c0_6 = arith.constant 0 : index
    %c0_7 = arith.constant 0 : index
    %74 = vector.load %arg4[%c0_6, %c0_7] : memref<512x128xf32, #tpu.memory_space<vmem>>, vector<512x128xf32>
    %cst_8 = arith.constant dense<0.000000e+00> : vector<8x128xf32>
    %75 = tpu.matmul %73, %74, %cst_8 {dimension_numbers = #tpu.dot_dimension_numbers<[1], [0], [0], [1], [0, 0, 1, 1], [], []>} : vector<8x512xf32>, vector<512x128xf32>, vector<8x128xf32> -> vector<8x128xf32>
    %c0_9 = arith.constant 0 : index
    %c0_10 = arith.constant 0 : index
    %76 = vector.load %arg5[%c0_9, %c0_10] : memref<1x128xf32, #tpu.memory_space<vmem>>, vector<1x128xf32>
    %77 = vector.broadcast %76 : vector<1x128xf32> to vector<8x128xf32>
    %78 = arith.addf %75, %77 : vector<8x128xf32>
    %cst_11 = arith.constant 0.000000e+00 : f32
    %79 = vector.broadcast %cst_11 : f32 to vector<8x128xf32>
    %80 = arith.maximumf %78, %79 : vector<8x128xf32>
    %81 = vector.extract_strided_slice %80 {offsets = [0, 0], sizes = [2, 128], strides = [1, 1]} : vector<8x128xf32> to vector<2x128xf32>
    %82 = vector.extract_strided_slice %80 {offsets = [2, 0], sizes = [2, 128], strides = [1, 1]} : vector<8x128xf32> to vector<2x128xf32>
    %83 = arith.maximumf %81, %82 : vector<2x128xf32>
    %84 = vector.extract_strided_slice %80 {offsets = [4, 0], sizes = [2, 128], strides = [1, 1]} : vector<8x128xf32> to vector<2x128xf32>
    %85 = arith.maximumf %83, %84 : vector<2x128xf32>
    %86 = vector.extract_strided_slice %80 {offsets = [6, 0], sizes = [2, 128], strides = [1, 1]} : vector<8x128xf32> to vector<2x128xf32>
    %87 = arith.maximumf %85, %86 : vector<2x128xf32>
    %c0_12 = arith.constant 0 : index
    %c0_13 = arith.constant 0 : index
    %88 = vector.load %arg6[%c0_12, %c0_13] : memref<128x128xf32, #tpu.memory_space<vmem>>, vector<128x128xf32>
    %cst_14 = arith.constant dense<0.000000e+00> : vector<2x128xf32>
    %89 = tpu.matmul %87, %88, %cst_14 {dimension_numbers = #tpu.dot_dimension_numbers<[1], [0], [0], [1], [0, 0, 1, 1], [], []>} : vector<2x128xf32>, vector<128x128xf32>, vector<2x128xf32> -> vector<2x128xf32>
    %c0_15 = arith.constant 0 : index
    %c0_16 = arith.constant 0 : index
    %90 = vector.load %arg7[%c0_15, %c0_16] : memref<1x128xf32, #tpu.memory_space<vmem>>, vector<1x128xf32>
    %91 = vector.broadcast %90 : vector<1x128xf32> to vector<2x128xf32>
    %92 = arith.addf %89, %91 : vector<2x128xf32>
    %cst_17 = arith.constant 0.000000e+00 : f32
    %93 = vector.broadcast %cst_17 : f32 to vector<2x128xf32>
    %94 = arith.maximumf %92, %93 : vector<2x128xf32>
    %c0_18 = arith.constant 0 : index
    %c0_19 = arith.constant 0 : index
    %95 = vector.load %arg8[%c0_18, %c0_19] : memref<128x128xf32, #tpu.memory_space<vmem>>, vector<128x128xf32>
    %cst_20 = arith.constant dense<0.000000e+00> : vector<2x128xf32>
    %96 = tpu.matmul %94, %95, %cst_20 {dimension_numbers = #tpu.dot_dimension_numbers<[1], [0], [0], [1], [0, 0, 1, 1], [], []>} : vector<2x128xf32>, vector<128x128xf32>, vector<2x128xf32> -> vector<2x128xf32>
    %c0_21 = arith.constant 0 : index
    %c0_22 = arith.constant 0 : index
    %97 = vector.load %arg9[%c0_21, %c0_22] : memref<1x128xf32, #tpu.memory_space<vmem>>, vector<1x128xf32>
    %98 = vector.broadcast %97 : vector<1x128xf32> to vector<2x128xf32>
    %99 = arith.addf %96, %98 : vector<2x128xf32>
    %cst_23 = arith.constant dense<0xFF800000> : vector<2xf32>
    %100 = vector.multi_reduction <maximumf>, %99, %cst_23 [1] : vector<2x128xf32> to vector<2xf32>
    %101 = vector.shape_cast %100 : vector<2xf32> to vector<2x1xf32>
    %102 = vector.broadcast %101 : vector<2x1xf32> to vector<2x128xf32>
    %103 = arith.subf %99, %102 : vector<2x128xf32>
    %104 = math.exp %103 : vector<2x128xf32>
    %cst_24 = arith.constant dense<0.000000e+00> : vector<2xf32>
    %105 = vector.multi_reduction <add>, %104, %cst_24 [1] : vector<2x128xf32> to vector<2xf32>
    %106 = vector.shape_cast %105 : vector<2xf32> to vector<2x1xf32>
    %107 = math.log %106 : vector<2x1xf32>
    %108 = vector.broadcast %107 : vector<2x1xf32> to vector<2x128xf32>
    %109 = arith.subf %103, %108 : vector<2x128xf32>
    %c0_25 = arith.constant 0 : index
    %c0_26 = arith.constant 0 : index
    %110 = vector.load %arg10[%c0_25, %c0_26] : memref<2x128xf32, #tpu.memory_space<vmem>>, vector<2x128xf32>
    tpu.vector_store %arg10[%c0_25, %c0_26], %109 {strides = array<i32>} : memref<2x128xf32, #tpu.memory_space<vmem>>, vector<2x128xf32>,
    return
  }
  func.func @transform_0(%arg0: i32) -> (i32, i32) {
    %c0_i32 = arith.constant 0 : i32
    %c0_i32_0 = arith.constant 0 : i32
    %c0_i32_1 = arith.constant 0 : i32
    return %c0_i32, %c0_i32_0 : i32, i32
  }
  func.func @transform_1(%arg0: i32) -> (i32, i32) {
    %c0_i32 = arith.constant 0 : i32
    %c0_i32_0 = arith.constant 0 : i32
    %c0_i32_1 = arith.constant 0 : i32
    return %c0_i32, %c0_i32_0 : i32, i32
  }
  func.func @transform_2(%arg0: i32) -> (i32, i32) {
    %c0_i32 = arith.constant 0 : i32
    %c0_i32_0 = arith.constant 0 : i32
    %c0_i32_1 = arith.constant 0 : i32
    return %c0_i32, %c0_i32_0 : i32, i32
  }
  func.func @transform_3(%arg0: i32) -> (i32, i32) {
    %c0_i32 = arith.constant 0 : i32
    %c0_i32_0 = arith.constant 0 : i32
    %c0_i32_1 = arith.constant 0 : i32
    return %c0_i32, %c0_i32_0 : i32, i32
  }
  func.func @transform_4(%arg0: i32) -> (i32, i32) {
    %c0_i32 = arith.constant 0 : i32
    %c0_i32_0 = arith.constant 0 : i32
    %c0_i32_1 = arith.constant 0 : i32
    return %c0_i32, %c0_i32_0 : i32, i32
  }
  func.func @transform_5(%arg0: i32) -> (i32, i32) {
    %c0_i32 = arith.constant 0 : i32
    %c0_i32_0 = arith.constant 0 : i32
    %c0_i32_1 = arith.constant 0 : i32
    return %c0_i32, %c0_i32_0 : i32, i32
  }
  func.func @transform_6(%arg0: i32) -> (i32, i32) {
    %c0_i32 = arith.constant 0 : i32
    %c0_i32_0 = arith.constant 0 : i32
    %c0_i32_1 = arith.constant 0 : i32
    return %c0_i32, %c0_i32_0 : i32, i32
  }
  func.func @transform_7(%arg0: i32) -> (i32, i32) {
    %c0_i32 = arith.constant 0 : i32
    %c0_i32_0 = arith.constant 0 : i32
    %c0_i32_1 = arith.constant 0 : i32
    return %c0_i32, %c0_i32_0 : i32, i32
  }
  func.func @transform_8(%arg0: i32) -> (i32, i32) {
    %c0_i32 = arith.constant 0 : i32
    %c0_i32_0 = arith.constant 0 : i32
    %c0_i32_1 = arith.constant 0 : i32
    return %c0_i32, %c0_i32_0 : i32, i32
  }
  func.func @transform_9(%arg0: i32) -> (i32, i32) {
    %c0_i32 = arith.constant 0 : i32
    %c0_i32_0 = arith.constant 0 : i32
    %c0_i32_1 = arith.constant 0 : i32
    return %c0_i32, %c0_i32_0 : i32, i32
  }
}

</mosaic_0001>

<llo_original>
// kernel: conv_model_forward.1
$region0: #{conv_model_forward.1}
  #allocation0 [shape = 'u32[]', space=smem, size = 0x4, offset = 0x4, fixed_abs, tag = 'smem constant byte address 0x4 - core index']
  #allocation1 [shape = 'u32[144,128]{1,0:T(1,128)}', space=vmem, size = 0x12000, scoped, tag = 'internal scratch']
  %s0 = inlined_call_operand.vmem [shape: f32[896,80], index: 0, kind: input, shape index: {}]
  %s1 = inlined_call_operand.vmem [shape: f32[80,128], index: 1, kind: input, shape index: {}]
  %s2 = inlined_call_operand.vmem [shape: f32[1,128], index: 2, kind: input, shape index: {}]
  %s3 = inlined_call_operand.vmem [shape: f32[512,128], index: 3, kind: input, shape index: {}]
  %s4 = inlined_call_operand.vmem [shape: f32[1,128], index: 4, kind: input, shape index: {}]
  %s5 = inlined_call_operand.vmem [shape: f32[128,128], index: 5, kind: input, shape index: {}]
  %s6 = inlined_call_operand.vmem [shape: f32[1,128], index: 6, kind: input, shape index: {}]
  %s7 = inlined_call_operand.vmem [shape: f32[128,128], index: 7, kind: input, shape index: {}]
  %s8 = inlined_call_operand.vmem [shape: f32[1,128], index: 8, kind: input, shape index: {}]
  %s9 = inlined_call_operand.hbm [shape: f32[2,128], index: 9, kind: output, shape index: {}]
  %s10 = sld [smem:[#allocation0]]
  $region46: #{conv_model_forward.1} parent=0
    _
  %s12 = ssub.s32 1, %s10
  %s13 = scalar_select 0, %s12, %s10
  $region1: #{conv_model_forward.1} parent=0
    #allocation2 [shape = 'u8[1024]{0}', space=vmem, size = 0x400, scoped, tag = 'output window, operand 0, single buffered']
    #allocation3 [shape = 's32[1]{0}', space=sflag, size = 0x4, scoped, tag = 'scoped memory for conv_model_forward.1']
    %14 = vsyncpa [#allocation3], 0
    // Predicated region
    $region2: #{conv_model_forward.1} parent=1 // pred_check
      _
    $region3: #{conv_model_forward.1} parent=1 // pred_check_branch
      %16 = sbr.rel (0) target = $region5
    $region4: #{conv_model_forward.1} parent=1 // pred_region
      _
    $region5: #{conv_model_forward.1} parent=1 // pred_fallthru
      _
    // Predicated region
    $region6: #{conv_model_forward.1} parent=1 // pred_check
      _
    $region7: #{conv_model_forward.1} parent=1 // pred_check_branch
      %18 = sbr.rel (0) target = $region9
    $region8: #{conv_model_forward.1} parent=1 // pred_region
      _
    $region9: #{conv_model_forward.1} parent=1 // pred_fallthru
      _
    // Predicated region
    $region10: #{conv_model_forward.1} parent=1 // pred_check
      _
    $region11: #{conv_model_forward.1} parent=1 // pred_check_branch
      %20 = sbr.rel (0) target = $region13
    $region12: #{conv_model_forward.1} parent=1 // pred_region
      _
    $region13: #{conv_model_forward.1} parent=1 // pred_fallthru
      _
    // Predicated region
    $region14: #{conv_model_forward.1} parent=1 // pred_check
      _
    $region15: #{conv_model_forward.1} parent=1 // pred_check_branch
      %22 = sbr.rel (0) target = $region17
    $region16: #{conv_model_forward.1} parent=1 // pred_region
      _
    $region17: #{conv_model_forward.1} parent=1 // pred_fallthru
      _
    // Predicated region
    $region18: #{conv_model_forward.1} parent=1 // pred_check
      _
    $region19: #{conv_model_forward.1} parent=1 // pred_check_branch
      %24 = sbr.rel (0) target = $region21
    $region20: #{conv_model_forward.1} parent=1 // pred_region
      _
    $region21: #{conv_model_forward.1} parent=1 // pred_fallthru
      _
    // Predicated region
    $region22: #{conv_model_forward.1} parent=1 // pred_check
      _
    $region23: #{conv_model_forward.1} parent=1 // pred_check_branch
      %26 = sbr.rel (0) target = $region25
    $region24: #{conv_model_forward.1} parent=1 // pred_region
      _
    $region25: #{conv_model_forward.1} parent=1 // pred_fallthru
      _
    // Predicated region
    $region26: #{conv_model_forward.1} parent=1 // pred_check
      _
    $region27: #{conv_model_forward.1} parent=1 // pred_check_branch
      %28 = sbr.rel (0) target = $region29
    $region28: #{conv_model_forward.1} parent=1 // pred_region
      _
    $region29: #{conv_model_forward.1} parent=1 // pred_fallthru
      _
    // Predicated region
    $region30: #{conv_model_forward.1} parent=1 // pred_check
      _
    $region31: #{conv_model_forward.1} parent=1 // pred_check_branch
      %30 = sbr.rel (0) target = $region33
    $region32: #{conv_model_forward.1} parent=1 // pred_region
      _
    $region33: #{conv_model_forward.1} parent=1 // pred_fallthru
      _
    // Predicated region
    $region34: #{conv_model_forward.1} parent=1 // pred_check
      _
    $region35: #{conv_model_forward.1} parent=1 // pred_check_branch
      %32 = sbr.rel (0) target = $region37
    $region36: #{conv_model_forward.1} parent=1 // pred_region
      _
    $region37: #{conv_model_forward.1} parent=1 // pred_fallthru
      _
    %v33 = vld [vmem:[%s0] sm:$0xff]
    %v34 = vld [vmem:[%s0 + $0x8] sm:$0xff]
    %v35 = vld [vmem:[%s0 + $0x10] sm:$0xff]
    %v36 = vld [vmem:[%s0 + $0x18] sm:$0xff]
    %v37 = vld [vmem:[%s0 + $0x20] sm:$0xff]
    %v38 = vld [vmem:[%s0 + $0x28] sm:$0xff]
    %v39 = vld [vmem:[%s0 + $0x30] sm:$0xff]
    %v40 = vld [vmem:[%s0 + $0x38] sm:$0xff]
    %v41 = vld [vmem:[%s0 + $0x40] sm:$0xff]
    %v42 = vld [vmem:[%s0 + $0x48] sm:$0xff]
    %v43 = vld [vmem:[%s0 + $0x50] sm:$0xff]
    %v44 = vld [vmem:[%s0 + $0x58] sm:$0xff]
    %v45 = vld [vmem:[%s0 + $0x60] sm:$0xff]
    %v46 = vld [vmem:[%s0 + $0x68] sm:$0xff]
    %v47 = vld [vmem:[%s0 + $0x70] sm:$0xff]
    %v48 = vld [vmem:[%s0 + $0x78] sm:$0xff]
    %v49 = vld [vmem:[%s0 + $0x80] sm:$0xff]
    %v50 = vld [vmem:[%s0 + $0x88] sm:$0xff]
    %v51 = vld [vmem:[%s0 + $0x90] sm:$0xff]
    %v52 = vld [vmem:[%s0 + $0x98] sm:$0xff]
    %v53 = vld [vmem:[%s0 + $0xa0] sm:$0xff]
    %v54 = vld [vmem:[%s0 + $0xa8] sm:$0xff]
    %v55 = vld [vmem:[%s0 + $0xb0] sm:$0xff]
    %v56 = vld [vmem:[%s0 + $0xb8] sm:$0xff]
    %v57 = vld [vmem:[%s0 + $0xc0] sm:$0xff]
    %v58 = vld [vmem:[%s0 + $0xc8] sm:$0xff]
    %v59 = vld [vmem:[%s0 + $0xd0] sm:$0xff]
    %v60 = vld [vmem:[%s0 + $0xd8] sm:$0xff]
    %v61 = vld [vmem:[%s0 + $0xe0] sm:$0xff]
    %v62 = vld [vmem:[%s0 + $0xe8] sm:$0xff]
    %v63 = vld [vmem:[%s0 + $0xf0] sm:$0xff]
    %v64 = vld [vmem:[%s0 + $0xf8] sm:$0xff]
    %v65 = vld [vmem:[%s0 + $0x100] sm:$0xff]
    %v66 = vld [vmem:[%s0 + $0x108] sm:$0xff]
    %v67 = vld [vmem:[%s0 + $0x110] sm:$0xff]
    %v68 = vld [vmem:[%s0 + $0x118] sm:$0xff]
    %v69 = vld [vmem:[%s0 + $0x120] sm:$0xff]
    %v70 = vld [vmem:[%s0 + $0x128] sm:$0xff]
    %v71 = vld [vmem:[%s0 + $0x130] sm:$0xff]
    %v72 = vld [vmem:[%s0 + $0x138] sm:$0xff]
    %v73 = vld [vmem:[%s0 + $0x140] sm:$0xff]
    %v74 = vld [vmem:[%s0 + $0x148] sm:$0xff]
    %v75 = vld [vmem:[%s0 + $0x150] sm:$0xff]
    %v76 = vld [vmem:[%s0 + $0x158] sm:$0xff]
    %v77 = vld [vmem:[%s0 + $0x160] sm:$0xff]
    %v78 = vld [vmem:[%s0 + $0x168] sm:$0xff]
    %v79 = vld [vmem:[%s0 + $0x170] sm:$0xff]
    %v80 = vld [vmem:[%s0 + $0x178] sm:$0xff]
    %v81 = vld [vmem:[%s0 + $0x180] sm:$0xff]
    %v82 = vld [vmem:[%s0 + $0x188] sm:$0xff]
    %v83 = vld [vmem:[%s0 + $0x190] sm:$0xff]
    %v84 = vld [vmem:[%s0 + $0x198] sm:$0xff]
    %v85 = vld [vmem:[%s0 + $0x1a0] sm:$0xff]
    %v86 = vld [vmem:[%s0 + $0x1a8] sm:$0xff]
    %v87 = vld [vmem:[%s0 + $0x1b0] sm:$0xff]
    %v88 = vld [vmem:[%s0 + $0x1b8] sm:$0xff]
    %v89 = vld [vmem:[%s0 + $0x1c0] sm:$0xff]
    %v90 = vld [vmem:[%s0 + $0x1c8] sm:$0xff]
    %v91 = vld [vmem:[%s0 + $0x1d0] sm:$0xff]
    %v92 = vld [vmem:[%s0 + $0x1d8] sm:$0xff]
    %v93 = vld [vmem:[%s0 + $0x1e0] sm:$0xff]
    %v94 = vld [vmem:[%s0 + $0x1e8] sm:$0xff]
    %v95 = vld [vmem:[%s0 + $0x1f0] sm:$0xff]
    %v96 = vld [vmem:[%s0 + $0x1f8] sm:$0xff]
    %v97 = vld [vmem:[%s0 + $0x200] sm:$0xff]
    %v98 = vld [vmem:[%s0 + $0x208] sm:$0xff]
    %v99 = vld [vmem:[%s0 + $0x210] sm:$0xff]
    %v100 = vld [vmem:[%s0 + $0x218] sm:$0xff]
    %v101 = vld [vmem:[%s0 + $0x220] sm:$0xff]
    %v102 = vld [vmem:[%s0 + $0x228] sm:$0xff]
    %v103 = vld [vmem:[%s0 + $0x230] sm:$0xff]
    %v104 = vld [vmem:[%s0 + $0x238] sm:$0xff]
    %v105 = vld [vmem:[%s0 + $0x240] sm:$0xff]
    %v106 = vld [vmem:[%s0 + $0x248] sm:$0xff]
    %v107 = vld [vmem:[%s0 + $0x250] sm:$0xff]
    %v108 = vld [vmem:[%s0 + $0x258] sm:$0xff]
    %v109 = vld [vmem:[%s0 + $0x260] sm:$0xff]
    %v110 = vld [vmem:[%s0 + $0x268] sm:$0xff]
    %v111 = vld [vmem:[%s0 + $0x270] sm:$0xff]
    %v112 = vld [vmem:[%s0 + $0x278] sm:$0xff]
    %v113 = vld [vmem:[%s0 + $0x280] sm:$0xff]
    %v114 = vld [vmem:[%s0 + $0x288] sm:$0xff]
    %v115 = vld [vmem:[%s0 + $0x290] sm:$0xff]
    %v116 = vld [vmem:[%s0 + $0x298] sm:$0xff]
    %v117 = vld [vmem:[%s0 + $0x2a0] sm:$0xff]
    %v118 = vld [vmem:[%s0 + $0x2a8] sm:$0xff]
    %v119 = vld [vmem:[%s0 + $0x2b0] sm:$0xff]
    %v120 = vld [vmem:[%s0 + $0x2b8] sm:$0xff]
    %v121 = vld [vmem:[%s0 + $0x2c0] sm:$0xff]
    %v122 = vld [vmem:[%s0 + $0x2c8] sm:$0xff]
    %v123 = vld [vmem:[%s0 + $0x2d0] sm:$0xff]
    %v124 = vld [vmem:[%s0 + $0x2d8] sm:$0xff]
    %v125 = vld [vmem:[%s0 + $0x2e0] sm:$0xff]
    %v126 = vld [vmem:[%s0 + $0x2e8] sm:$0xff]
    %v127 = vld [vmem:[%s0 + $0x2f0] sm:$0xff]
    %v128 = vld [vmem:[%s0 + $0x2f8] sm:$0xff]
    %v129 = vld [vmem:[%s0 + $0x300] sm:$0xff]
    %v130 = vld [vmem:[%s0 + $0x308] sm:$0xff]
    %v131 = vld [vmem:[%s0 + $0x310] sm:$0xff]
    %v132 = vld [vmem:[%s0 + $0x318] sm:$0xff]
    %v133 = vld [vmem:[%s0 + $0x320] sm:$0xff]
    %v134 = vld [vmem:[%s0 + $0x328] sm:$0xff]
    %v135 = vld [vmem:[%s0 + $0x330] sm:$0xff]
    %v136 = vld [vmem:[%s0 + $0x338] sm:$0xff]
    %v137 = vld [vmem:[%s0 + $0x340] sm:$0xff]
    %v138 = vld [vmem:[%s0 + $0x348] sm:$0xff]
    %v139 = vld [vmem:[%s0 + $0x350] sm:$0xff]
    %v140 = vld [vmem:[%s0 + $0x358] sm:$0xff]
    %v141 = vld [vmem:[%s0 + $0x360] sm:$0xff]
    %v142 = vld [vmem:[%s0 + $0x368] sm:$0xff]
    %v143 = vld [vmem:[%s0 + $0x370] sm:$0xff]
    %v144 = vld [vmem:[%s0 + $0x378] sm:$0xff]
    %v145 = vld [vmem:[%s1] sm:$0xff]
    %v146 = vld [vmem:[%s1 + $0x8] sm:$0xff]
    %v147 = vld [vmem:[%s1 + $0x10] sm:$0xff]
    %v148 = vld [vmem:[%s1 + $0x18] sm:$0xff]
    %v149 = vld [vmem:[%s1 + $0x20] sm:$0xff]
    %v150 = vld [vmem:[%s1 + $0x28] sm:$0xff]
    %v151 = vld [vmem:[%s1 + $0x30] sm:$0xff]
    %v152 = vld [vmem:[%s1 + $0x38] sm:$0xff]
    %v153 = vld [vmem:[%s1 + $0x40] sm:$0xff]
    %v154 = vld [vmem:[%s1 + $0x48] sm:$0xff]
    %vm155 = vcmask 654336
    %v157 = vsel %vm155, %v33, 0
    %v160 = vsel %vm155, %v34, 0
    %v163 = vsel %vm155, %v35, 0
    %v166 = vsel %vm155, %v36, 0
    %v169 = vsel %vm155, %v37, 0
    %v172 = vsel %vm155, %v38, 0
    %v175 = vsel %vm155, %v39, 0
    %v178 = vsel %vm155, %v40, 0
    %v181 = vsel %vm155, %v41, 0
    %v184 = vsel %vm155, %v42, 0
    %v187 = vsel %vm155, %v43, 0
    %v190 = vsel %vm155, %v44, 0
    %v193 = vsel %vm155, %v45, 0
    %v196 = vsel %vm155, %v46, 0
    %v199 = vsel %vm155, %v47, 0
    %v202 = vsel %vm155, %v48, 0
    %v205 = vsel %vm155, %v49, 0
    %v208 = vsel %vm155, %v50, 0
    %v211 = vsel %vm155, %v51, 0
    %v214 = vsel %vm155, %v52, 0
    %v217 = vsel %vm155, %v53, 0
    %v220 = vsel %vm155, %v54, 0
    %v223 = vsel %vm155, %v55, 0
    %v226 = vsel %vm155, %v56, 0
    %v229 = vsel %vm155, %v57, 0
    %v232 = vsel %vm155, %v58, 0
    %v235 = vsel %vm155, %v59, 0
    %v238 = vsel %vm155, %v60, 0
    %v241 = vsel %vm155, %v61, 0
    %v244 = vsel %vm155, %v62, 0
    %v247 = vsel %vm155, %v63, 0
    %v250 = vsel %vm155, %v64, 0
    %v253 = vsel %vm155, %v65, 0
    %v256 = vsel %vm155, %v66, 0
    %v259 = vsel %vm155, %v67, 0
    %v262 = vsel %vm155, %v68, 0
    %v265 = vsel %vm155, %v69, 0
    %v268 = vsel %vm155, %v70, 0
    %v271 = vsel %vm155, %v71, 0
    %v274 = vsel %vm155, %v72, 0
    %v277 = vsel %vm155, %v73, 0
    %v280 = vsel %vm155, %v74, 0
    %v283 = vsel %vm155, %v75, 0
    %v286 = vsel %vm155, %v76, 0
    %v289 = vsel %vm155, %v77, 0
    %v292 = vsel %vm155, %v78, 0
    %v295 = vsel %vm155, %v79, 0
    %v298 = vsel %vm155, %v80, 0
    %v301 = vsel %vm155, %v81, 0
    %v304 = vsel %vm155, %v82, 0
    %v307 = vsel %vm155, %v83, 0
    %v310 = vsel %vm155, %v84, 0
    %v313 = vsel %vm155, %v85, 0
    %v316 = vsel %vm155, %v86, 0
    %v319 = vsel %vm155, %v87, 0
    %v322 = vsel %vm155, %v88, 0
    %v325 = vsel %vm155, %v89, 0
    %v328 = vsel %vm155, %v90, 0
    %v331 = vsel %vm155, %v91, 0
    %v334 = vsel %vm155, %v92, 0
    %v337 = vsel %vm155, %v93, 0
    %v340 = vsel %vm155, %v94, 0
    %v343 = vsel %vm155, %v95, 0
    %v346 = vsel %vm155, %v96, 0
    %v349 = vsel %vm155, %v97, 0
    %v352 = vsel %vm155, %v98, 0
    %v355 = vsel %vm155, %v99, 0
    %v358 = vsel %vm155, %v100, 0
    %v361 = vsel %vm155, %v101, 0
    %v364 = vsel %vm155, %v102, 0
    %v367 = vsel %vm155, %v103, 0
    %v370 = vsel %vm155, %v104, 0
    %v373 = vsel %vm155, %v105, 0
    %v376 = vsel %vm155, %v106, 0
    %v379 = vsel %vm155, %v107, 0
    %v382 = vsel %vm155, %v108, 0
    %v385 = vsel %vm155, %v109, 0
    %v388 = vsel %vm155, %v110, 0
    %v391 = vsel %vm155, %v111, 0
    %v394 = vsel %vm155, %v112, 0
    %v397 = vsel %vm155, %v113, 0
    %v400 = vsel %vm155, %v114, 0
    %v403 = vsel %vm155, %v115, 0
    %v406 = vsel %vm155, %v116, 0
    %v409 = vsel %vm155, %v117, 0
    %v412 = vsel %vm155, %v118, 0
    %v415 = vsel %vm155, %v119, 0
    %v418 = vsel %vm155, %v120, 0
    %v421 = vsel %vm155, %v121, 0
    %v424 = vsel %vm155, %v122, 0
    %v427 = vsel %vm155, %v123, 0
    %v430 = vsel %vm155, %v124, 0
    %v433 = vsel %vm155, %v125, 0
    %v436 = vsel %vm155, %v126, 0
    %v439 = vsel %vm155, %v127, 0
    %v442 = vsel %vm155, %v128, 0
    %v445 = vsel %vm155, %v129, 0
    %v448 = vsel %vm155, %v130, 0
    %v451 = vsel %vm155, %v131, 0
    %v454 = vsel %vm155, %v132, 0
    %v457 = vsel %vm155, %v133, 0
    %v460 = vsel %vm155, %v134, 0
    %v463 = vsel %vm155, %v135, 0
    %v466 = vsel %vm155, %v136, 0
    %v469 = vsel %vm155, %v137, 0
    %v472 = vsel %vm155, %v138, 0
    %v475 = vsel %vm155, %v139, 0
    %v478 = vsel %vm155, %v140, 0
    %v481 = vsel %vm155, %v141, 0
    %v484 = vsel %vm155, %v142, 0
    %v487 = vsel %vm155, %v143, 0
    %v490 = vsel %vm155, %v144, 0
    %492 = vmatprep.subr.mxu0 0.0
    %493 = vmatpush1.msra.mxu0 %v145
    %494 = vmatprep.subr.mxu0 0.0
    %495 = vmatpush1.msra.mxu0 %v146
    %496 = vmatprep.subr.mxu0 0.0
    %497 = vmatpush1.msra.mxu0 %v147
    %498 = vmatprep.subr.mxu0 0.0
    %499 = vmatpush1.msra.mxu0 %v148
    %500 = vmatprep.subr.mxu0 0.0
    %501 = vmatpush1.msra.mxu0 %v149
    %502 = vmatprep.subr.mxu0 0.0
    %503 = vmatpush1.msra.mxu0 %v150
    %504 = vmatprep.subr.mxu0 0.0
    %505 = vmatpush1.msra.mxu0 %v151
    %506 = vmatprep.subr.mxu0 0.0
    %507 = vmatpush1.msra.mxu0 %v152
    %508 = vmatprep.subr.mxu0 0.0
    %509 = vmatpush1.msra.mxu0 %v153
    %510 = vmatprep.subr.mxu0 0.0
    %511 = vmatpush1.msra.mxu0 %v154
    %512 = vmatprep.subr.mxu0 0.0
    %513 = vmatpush1.msra.mxu0 0.0
    %514 = vmatprep.subr.mxu0 0.0
    %515 = vmatpush1.msra.mxu0 0.0
    %516 = vmatprep.subr.mxu0 0.0
    %517 = vmatpush1.msra.mxu0 0.0
    %518 = vmatprep.subr.mxu0 0.0
    %519 = vmatpush1.msra.mxu0 0.0
    %520 = vmatprep.subr.mxu0 0.0
    %521 = vmatpush1.msra.mxu0 0.0
    %522 = vmatprep.subr.mxu0 0.0
    %523 = vmatpush1.msra.mxu0 0.0
    %524 = vmatprep.subr.mxu0 0.0
    %525 = vmatpush1.msra.mxu0 0.0
    %526 = vmatprep.subr.mxu0 0.0
    %527 = vmatpush1.msra.mxu0 0.0
    %528 = vmatprep.subr.mxu0 0.0
    %529 = vmatpush1.msra.mxu0 0.0
    %530 = vmatprep.subr.mxu0 0.0
    %531 = vmatpush1.msra.mxu0 0.0
    %532 = vmatprep.subr.mxu0 0.0
    %533 = vmatpush1.msra.mxu0 0.0
    %534 = vmatprep.subr.mxu0 0.0
    %535 = vmatpush1.msra.mxu0 0.0
    %536 = vmatprep.subr.mxu0 0.0
    %537 = vmatpush1.msra.mxu0 0.0
    %538 = vmatprep.subr.mxu0 0.0
    %539 = vmatpush1.msra.mxu0 0.0
    %540 = vmatprep.subr.mxu0 0.0
    %541 = vmatpush1.msra.mxu0 0.0
    %542 = vmatprep.subr.mxu0 0.0
    %543 = vmatpush1.msra.mxu0 0.0
    %544 = vmatprep.subr.mxu0 0.0
    %545 = vmatpush1.msra.mxu0 0.0
    %546 = vmatprep.subr.mxu0 0.0
    %547 = vmatpush1.msra.mxu0 0.0
    %548 = vmatprep.subr.mxu0 0.0
    %549 = vmatpush1.msra.mxu0 0.0
    %550 = vmatprep.subr.mxu0 0.0
    %551 = vmatpush1.msra.mxu0 0.0
    %552 = vmatprep.subr.mxu0 0.0
    %553 = vmatpush1.msra.mxu0 0.0
    %554 = vmatprep.subr.mxu0 0.0
    %555 = vmatpush1.msra.mxu0 0.0
    %556 = vmatprep.mubr.f32.mxu0 0.0
    %557 = vmatmul.mubr.f32.gmra.mrb[0].mxu0 %v157
    %v558 = vpop.f32.mrb[0].mxu0
    %v559 = vadd.f32 0.0, %v558
    %v560 = vpop.f32.mrb[0].mxu0
    %561 = vmatprep.mubr.f32.mxu0 0.0
    %562 = vmatmul.mubr.f32.gmra.mrb[0].mxu0 %v160
    %v563 = vpop.f32.mrb[0].mxu0
    %v564 = vadd.f32 0.0, %v563
    %v565 = vpop.f32.mrb[0].mxu0
    %566 = vmatprep.mubr.f32.mxu0 0.0
    %567 = vmatmul.mubr.f32.gmra.mrb[0].mxu0 %v163
    %v568 = vpop.f32.mrb[0].mxu0
    %v569 = vadd.f32 0.0, %v568
    %v570 = vpop.f32.mrb[0].mxu0
    %571 = vmatprep.mubr.f32.mxu0 0.0
    %572 = vmatmul.mubr.f32.gmra.mrb[0].mxu0 %v166
    %v573 = vpop.f32.mrb[0].mxu0
    %v574 = vadd.f32 0.0, %v573
    %v575 = vpop.f32.mrb[0].mxu0
    %576 = vmatprep.mubr.f32.mxu0 0.0
    %577 = vmatmul.mubr.f32.gmra.mrb[0].mxu0 %v169
    %v578 = vpop.f32.mrb[0].mxu0
    %v579 = vadd.f32 0.0, %v578
    %v580 = vpop.f32.mrb[0].mxu0
    %581 = vmatprep.mubr.f32.mxu0 0.0
    %582 = vmatmul.mubr.f32.gmra.mrb[0].mxu0 %v172
    %v583 = vpop.f32.mrb[0].mxu0
    %v584 = vadd.f32 0.0, %v583
    %v585 = vpop.f32.mrb[0].mxu0
    %586 = vmatprep.mubr.f32.mxu0 0.0
    %587 = vmatmul.mubr.f32.gmra.mrb[0].mxu0 %v175
    %v588 = vpop.f32.mrb[0].mxu0
    %v589 = vadd.f32 0.0, %v588
    %v590 = vpop.f32.mrb[0].mxu0
    %591 = vmatprep.mubr.f32.mxu0 0.0
    %592 = vmatmul.mubr.f32.gmra.mrb[0].mxu0 %v178
    %v593 = vpop.f32.mrb[0].mxu0
    %v594 = vadd.f32 0.0, %v593
    %v595 = vpop.f32.mrb[0].mxu0
    %596 = vmatprep.mubr.f32.mxu0 0.0
    %597 = vmatmul.mubr.f32.gmra.mrb[0].mxu0 %v181
    %v598 = vpop.f32.mrb[0].mxu0
    %v599 = vadd.f32 0.0, %v598
    %v600 = vpop.f32.mrb[0].mxu0
    %601 = vmatprep.mubr.f32.mxu0 0.0
    %602 = vmatmul.mubr.f32.gmra.mrb[0].mxu0 %v184
    %v603 = vpop.f32.mrb[0].mxu0
    %v604 = vadd.f32 0.0, %v603
    %v605 = vpop.f32.mrb[0].mxu0
    %606 = vmatprep.mubr.f32.mxu0 0.0
    %607 = vmatmul.mubr.f32.gmra.mrb[0].mxu0 %v187
    %v608 = vpop.f32.mrb[0].mxu0
    %v609 = vadd.f32 0.0, %v608
    %v610 = vpop.f32.mrb[0].mxu0
    %611 = vmatprep.mubr.f32.mxu0 0.0
    %612 = vmatmul.mubr.f32.gmra.mrb[0].mxu0 %v190
    %v613 = vpop.f32.mrb[0].mxu0
    %v614 = vadd.f32 0.0, %v613
    %v615 = vpop.f32.mrb[0].mxu0
    %616 = vmatprep.mubr.f32.mxu0 0.0
    %617 = vmatmul.mubr.f32.gmra.mrb[0].mxu0 %v193
    %v618 = vpop.f32.mrb[0].mxu0
    %v619 = vadd.f32 0.0, %v618
    %v620 = vpop.f32.mrb[0].mxu0
    %621 = vmatprep.mubr.f32.mxu0 0.0
    %622 = vmatmul.mubr.f32.gmra.mrb[0].mxu0 %v196
    %v623 = vpop.f32.mrb[0].mxu0
    %v624 = vadd.f32 0.0, %v623
    %v625 = vpop.f32.mrb[0].mxu0
    %626 = vmatprep.mubr.f32.mxu0 0.0
    %627 = vmatmul.mubr.f32.gmra.mrb[0].mxu0 %v199
    %v628 = vpop.f32.mrb[0].mxu0
    %v629 = vadd.f32 0.0, %v628
    %v630 = vpop.f32.mrb[0].mxu0
    %631 = vmatprep.mubr.f32.mxu0 0.0
    %632 = vmatmul.mubr.f32.gmra.mrb[0].mxu0 %v202
    %v633 = vpop.f32.mrb[0].mxu0
    %v634 = vadd.f32 0.0, %v633
    %v635 = vpop.f32.mrb[0].mxu0
    %636 = vmatprep.mubr.f32.mxu0 0.0
    %637 = vmatmul.mubr.f32.gmra.mrb[0].mxu0 %v205
    %v638 = vpop.f32.mrb[0].mxu0
    %v639 = vadd.f32 0.0, %v638
    %v640 = vpop.f32.mrb[0].mxu0
    %641 = vmatprep.mubr.f32.mxu0 0.0
    %642 = vmatmul.mubr.f32.gmra.mrb[0].mxu0 %v208
    %v643 = vpop.f32.mrb[0].mxu0
    %v644 = vadd.f32 0.0, %v643
    %v645 = vpop.f32.mrb[0].mxu0
    %646 = vmatprep.mubr.f32.mxu0 0.0
    %647 = vmatmul.mubr.f32.gmra.mrb[0].mxu0 %v211
    %v648 = vpop.f32.mrb[0].mxu0
    %v649 = vadd.f32 0.0, %v648
    %v650 = vpop.f32.mrb[0].mxu0
    %651 = vmatprep.mubr.f32.mxu0 0.0
    %652 = vmatmul.mubr.f32.gmra.mrb[0].mxu0 %v214
    %v653 = vpop.f32.mrb[0].mxu0
    %v654 = vadd.f32 0.0, %v653
    %v655 = vpop.f32.mrb[0].mxu0
    %656 = vmatprep.mubr.f32.mxu0 0.0
    %657 = vmatmul.mubr.f32.gmra.mrb[0].mxu0 %v217
    %v658 = vpop.f32.mrb[0].mxu0
    %v659 = vadd.f32 0.0, %v658
    %v660 = vpop.f32.mrb[0].mxu0
    %661 = vmatprep.mubr.f32.mxu0 0.0
    %662 = vmatmul.mubr.f32.gmra.mrb[0].mxu0 %v220
    %v663 = vpop.f32.mrb[0].mxu0
    %v664 = vadd.f32 0.0, %v663
    %v665 = vpop.f32.mrb[0].mxu0
    %666 = vmatprep.mubr.f32.mxu0 0.0
    %667 = vmatmul.mubr.f32.gmra.mrb[0].mxu0 %v223
    %v668 = vpop.f32.mrb[0].mxu0
    %v669 = vadd.f32 0.0, %v668
    %v670 = vpop.f32.mrb[0].mxu0
    %671 = vmatprep.mubr.f32.mxu0 0.0
    %672 = vmatmul.mubr.f32.gmra.mrb[0].mxu0 %v226
    %v673 = vpop.f32.mrb[0].mxu0
    %v674 = vadd.f32 0.0, %v673
    %v675 = vpop.f32.mrb[0].mxu0
    %676 = vmatprep.mubr.f32.mxu0 0.0
    %677 = vmatmul.mubr.f32.gmra.mrb[0].mxu0 %v229
    %v678 = vpop.f32.mrb[0].mxu0
    %v679 = vadd.f32 0.0, %v678
    %v680 = vpop.f32.mrb[0].mxu0
    %681 = vmatprep.mubr.f32.mxu0 0.0
    %682 = vmatmul.mubr.f32.gmra.mrb[0].mxu0 %v232
    %v683 = vpop.f32.mrb[0].mxu0
    %v684 = vadd.f32 0.0, %v683
    %v685 = vpop.f32.mrb[0].mxu0
    %686 = vmatprep.mubr.f32.mxu0 0.0
    %687 = vmatmul.mubr.f32.gmra.mrb[0].mxu0 %v235
    %v688 = vpop.f32.mrb[0].mxu0
    %v689 = vadd.f32 0.0, %v688
    %v690 = vpop.f32.mrb[0].mxu0
    %691 = vmatprep.mubr.f32.mxu0 0.0
    %692 = vmatmul.mubr.f32.gmra.mrb[0].mxu0 %v238
    %v693 = vpop.f32.mrb[0].mxu0
    %v694 = vadd.f32 0.0, %v693
    %v695 = vpop.f32.mrb[0].mxu0
    %696 = vmatprep.mubr.f32.mxu0 0.0
    %697 = vmatmul.mubr.f32.gmra.mrb[0].mxu0 %v241
    %v698 = vpop.f32.mrb[0].mxu0
    %v699 = vadd.f32 0.0, %v698
    %v700 = vpop.f32.mrb[0].mxu0
    %701 = vmatprep.mubr.f32.mxu0 0.0
    %702 = vmatmul.mubr.f32.gmra.mrb[0].mxu0 %v244
    %v703 = vpop.f32.mrb[0].mxu0
    %v704 = vadd.f32 0.0, %v703
    %v705 = vpop.f32.mrb[0].mxu0
    %706 = vmatprep.mubr.f32.mxu0 0.0
    %707 = vmatmul.mubr.f32.gmra.mrb[0].mxu0 %v247
    %v708 = vpop.f32.mrb[0].mxu0
    %v709 = vadd.f32 0.0, %v708
    %v710 = vpop.f32.mrb[0].mxu0
    %711 = vmatprep.mubr.f32.mxu0 0.0
    %712 = vmatmul.mubr.f32.gmra.mrb[0].mxu0 %v250
    %v713 = vpop.f32.mrb[0].mxu0
    %v714 = vadd.f32 0.0, %v713
    %v715 = vpop.f32.mrb[0].mxu0
    %716 = vmatprep.mubr.f32.mxu0 0.0
    %717 = vmatmul.mubr.f32.gmra.mrb[0].mxu0 %v253
    %v718 = vpop.f32.mrb[0].mxu0
    %v719 = vadd.f32 0.0, %v718
    %v720 = vpop.f32.mrb[0].mxu0
    %721 = vmatprep.mubr.f32.mxu0 0.0
    %722 = vmatmul.mubr.f32.gmra.mrb[0].mxu0 %v256
    %v723 = vpop.f32.mrb[0].mxu0
    %v724 = vadd.f32 0.0, %v723
    %v725 = vpop.f32.mrb[0].mxu0
    %726 = vmatprep.mubr.f32.mxu0 0.0
    %727 = vmatmul.mubr.f32.gmra.mrb[0].mxu0 %v259
    %v728 = vpop.f32.mrb[0].mxu0
    %v729 = vadd.f32 0.0, %v728
    %v730 = vpop.f32.mrb[0].mxu0
    %731 = vmatprep.mubr.f32.mxu0 0.0
    %732 = vmatmul.mubr.f32.gmra.mrb[0].mxu0 %v262
    %v733 = vpop.f32.mrb[0].mxu0
    %v734 = vadd.f32 0.0, %v733
    %v735 = vpop.f32.mrb[0].mxu0
    %736 = vmatprep.mubr.f32.mxu0 0.0
    %737 = vmatmul.mubr.f32.gmra.mrb[0].mxu0 %v265
    %v738 = vpop.f32.mrb[0].mxu0
    %v739 = vadd.f32 0.0, %v738
    %v740 = vpop.f32.mrb[0].mxu0
    %741 = vmatprep.mubr.f32.mxu0 0.0
    %742 = vmatmul.mubr.f32.gmra.mrb[0].mxu0 %v268
    %v743 = vpop.f32.mrb[0].mxu0
    %v744 = vadd.f32 0.0, %v743
    %v745 = vpop.f32.mrb[0].mxu0
    %746 = vmatprep.mubr.f32.mxu0 0.0
    %747 = vmatmul.mubr.f32.gmra.mrb[0].mxu0 %v271
    %v748 = vpop.f32.mrb[0].mxu0
    %v749 = vadd.f32 0.0, %v748
    %v750 = vpop.f32.mrb[0].mxu0
    %751 = vmatprep.mubr.f32.mxu0 0.0
    %752 = vmatmul.mubr.f32.gmra.mrb[0].mxu0 %v274
    %v753 = vpop.f32.mrb[0].mxu0
    %v754 = vadd.f32 0.0, %v753
    %v755 = vpop.f32.mrb[0].mxu0
    %756 = vmatprep.mubr.f32.mxu0 0.0
    %757 = vmatmul.mubr.f32.gmra.mrb[0].mxu0 %v277
    %v758 = vpop.f32.mrb[0].mxu0
    %v759 = vadd.f32 0.0, %v758
    %v760 = vpop.f32.mrb[0].mxu0
    %761 = vmatprep.mubr.f32.mxu0 0.0
    %762 = vmatmul.mubr.f32.gmra.mrb[0].mxu0 %v280
    %v763 = vpop.f32.mrb[0].mxu0
    %v764 = vadd.f32 0.0, %v763
    %v765 = vpop.f32.mrb[0].mxu0
    %766 = vmatprep.mubr.f32.mxu0 0.0
    %767 = vmatmul.mubr.f32.gmra.mrb[0].mxu0 %v283
    %v768 = vpop.f32.mrb[0].mxu0
    %v769 = vadd.f32 0.0, %v768
    %v770 = vpop.f32.mrb[0].mxu0
    %771 = vmatprep.mubr.f32.mxu0 0.0
    %772 = vmatmul.mubr.f32.gmra.mrb[0].mxu0 %v286
    %v773 = vpop.f32.mrb[0].mxu0
    %v774 = vadd.f32 0.0, %v773
    %v775 = vpop.f32.mrb[0].mxu0
    %776 = vmatprep.mubr.f32.mxu0 0.0
    %777 = vmatmul.mubr.f32.gmra.mrb[0].mxu0 %v289
    %v778 = vpop.f32.mrb[0].mxu0
    %v779 = vadd.f32 0.0, %v778
    %v780 = vpop.f32.mrb[0].mxu0
    %781 = vmatprep.mubr.f32.mxu0 0.0
    %782 = vmatmul.mubr.f32.gmra.mrb[0].mxu0 %v292
    %v783 = vpop.f32.mrb[0].mxu0
    %v784 = vadd.f32 0.0, %v783
    %v785 = vpop.f32.mrb[0].mxu0
    %786 = vmatprep.mubr.f32.mxu0 0.0
    %787 = vmatmul.mubr.f32.gmra.mrb[0].mxu0 %v295
    %v788 = vpop.f32.mrb[0].mxu0
    %v789 = vadd.f32 0.0, %v788
    %v790 = vpop.f32.mrb[0].mxu0
    %791 = vmatprep.mubr.f32.mxu0 0.0
    %792 = vmatmul.mubr.f32.gmra.mrb[0].mxu0 %v298
    %v793 = vpop.f32.mrb[0].mxu0
    %v794 = vadd.f32 0.0, %v793
    %v795 = vpop.f32.mrb[0].mxu0
    %796 = vmatprep.mubr.f32.mxu0 0.0
    %797 = vmatmul.mubr.f32.gmra.mrb[0].mxu0 %v301
    %v798 = vpop.f32.mrb[0].mxu0
    %v799 = vadd.f32 0.0, %v798
    %v800 = vpop.f32.mrb[0].mxu0
    %801 = vmatprep.mubr.f32.mxu0 0.0
    %802 = vmatmul.mubr.f32.gmra.mrb[0].mxu0 %v304
    %v803 = vpop.f32.mrb[0].mxu0
    %v804 = vadd.f32 0.0, %v803
    %v805 = vpop.f32.mrb[0].mxu0
    %806 = vmatprep.mubr.f32.mxu0 0.0
    %807 = vmatmul.mubr.f32.gmra.mrb[0].mxu0 %v307
    %v808 = vpop.f32.mrb[0].mxu0
    %v809 = vadd.f32 0.0, %v808
    %v810 = vpop.f32.mrb[0].mxu0
    %811 = vmatprep.mubr.f32.mxu0 0.0
    %812 = vmatmul.mubr.f32.gmra.mrb[0].mxu0 %v310
    %v813 = vpop.f32.mrb[0].mxu0
    %v814 = vadd.f32 0.0, %v813
    %v815 = vpop.f32.mrb[0].mxu0
    %816 = vmatprep.mubr.f32.mxu0 0.0
    %817 = vmatmul.mubr.f32.gmra.mrb[0].mxu0 %v313
    %v818 = vpop.f32.mrb[0].mxu0
    %v819 = vadd.f32 0.0, %v818
    %v820 = vpop.f32.mrb[0].mxu0
    %821 = vmatprep.mubr.f32.mxu0 0.0
    %822 = vmatmul.mubr.f32.gmra.mrb[0].mxu0 %v316
    %v823 = vpop.f32.mrb[0].mxu0
    %v824 = vadd.f32 0.0, %v823
    %v825 = vpop.f32.mrb[0].mxu0
    %826 = vmatprep.mubr.f32.mxu0 0.0
    %827 = vmatmul.mubr.f32.gmra.mrb[0].mxu0 %v319
    %v828 = vpop.f32.mrb[0].mxu0
    %v829 = vadd.f32 0.0, %v828
    %v830 = vpop.f32.mrb[0].mxu0
    %831 = vmatprep.mubr.f32.mxu0 0.0
    %832 = vmatmul.mubr.f32.gmra.mrb[0].mxu0 %v322
    %v833 = vpop.f32.mrb[0].mxu0
    %v834 = vadd.f32 0.0, %v833
    %v835 = vpop.f32.mrb[0].mxu0
    %836 = vmatprep.mubr.f32.mxu0 0.0
    %837 = vmatmul.mubr.f32.gmra.mrb[0].mxu0 %v325
    %v838 = vpop.f32.mrb[0].mxu0
    %v839 = vadd.f32 0.0, %v838
    %v840 = vpop.f32.mrb[0].mxu0
    %841 = vmatprep.mubr.f32.mxu0 0.0
    %842 = vmatmul.mubr.f32.gmra.mrb[0].mxu0 %v328
    %v843 = vpop.f32.mrb[0].mxu0
    %v844 = vadd.f32 0.0, %v843
    %v845 = vpop.f32.mrb[0].mxu0
    %846 = vmatprep.mubr.f32.mxu0 0.0
    %847 = vmatmul.mubr.f32.gmra.mrb[0].mxu0 %v331
    %v848 = vpop.f32.mrb[0].mxu0
    %v849 = vadd.f32 0.0, %v848
    %v850 = vpop.f32.mrb[0].mxu0
    %851 = vmatprep.mubr.f32.mxu0 0.0
    %852 = vmatmul.mubr.f32.gmra.mrb[0].mxu0 %v334
    %v853 = vpop.f32.mrb[0].mxu0
    %v854 = vadd.f32 0.0, %v853
    %v855 = vpop.f32.mrb[0].mxu0
    %856 = vmatprep.mubr.f32.mxu0 0.0
    %857 = vmatmul.mubr.f32.gmra.mrb[0].mxu0 %v337
    %v858 = vpop.f32.mrb[0].mxu0
    %v859 = vadd.f32 0.0, %v858
    %v860 = vpop.f32.mrb[0].mxu0
    %861 = vmatprep.mubr.f32.mxu0 0.0
    %862 = vmatmul.mubr.f32.gmra.mrb[0].mxu0 %v340
    %v863 = vpop.f32.mrb[0].mxu0
    %v864 = vadd.f32 0.0, %v863
    %v865 = vpop.f32.mrb[0].mxu0
    %866 = vmatprep.mubr.f32.mxu0 0.0
    %867 = vmatmul.mubr.f32.gmra.mrb[0].mxu0 %v343
    %v868 = vpop.f32.mrb[0].mxu0
    %v869 = vadd.f32 0.0, %v868
    %v870 = vpop.f32.mrb[0].mxu0
    %871 = vmatprep.mubr.f32.mxu0 0.0
    %872 = vmatmul.mubr.f32.gmra.mrb[0].mxu0 %v346
    %v873 = vpop.f32.mrb[0].mxu0
    %v874 = vadd.f32 0.0, %v873
    %v875 = vpop.f32.mrb[0].mxu0
    %876 = vmatprep.mubr.f32.mxu0 0.0
    %877 = vmatmul.mubr.f32.gmra.mrb[0].mxu0 %v349
    %v878 = vpop.f32.mrb[0].mxu0
    %v879 = vadd.f32 0.0, %v878
    %v880 = vpop.f32.mrb[0].mxu0
    %881 = vmatprep.mubr.f32.mxu0 0.0
    %882 = vmatmul.mubr.f32.gmra.mrb[0].mxu0 %v352
    %v883 = vpop.f32.mrb[0].mxu0
    %v884 = vadd.f32 0.0, %v883
    %v885 = vpop.f32.mrb[0].mxu0
    %886 = vmatprep.mubr.f32.mxu0 0.0
    %887 = vmatmul.mubr.f32.gmra.mrb[0].mxu0 %v355
    %v888 = vpop.f32.mrb[0].mxu0
    %v889 = vadd.f32 0.0, %v888
    %v890 = vpop.f32.mrb[0].mxu0
    %891 = vmatprep.mubr.f32.mxu0 0.0
    %892 = vmatmul.mubr.f32.gmra.mrb[0].mxu0 %v358
    %v893 = vpop.f32.mrb[0].mxu0
    %v894 = vadd.f32 0.0, %v893
    %v895 = vpop.f32.mrb[0].mxu0
    %896 = vmatprep.mubr.f32.mxu0 0.0
    %897 = vmatmul.mubr.f32.gmra.mrb[0].mxu0 %v361
    %v898 = vpop.f32.mrb[0].mxu0
    %v899 = vadd.f32 0.0, %v898
    %v900 = vpop.f32.mrb[0].mxu0
    %901 = vmatprep.mubr.f32.mxu0 0.0
    %902 = vmatmul.mubr.f32.gmra.mrb[0].mxu0 %v364
    %v903 = vpop.f32.mrb[0].mxu0
    %v904 = vadd.f32 0.0, %v903
    %v905 = vpop.f32.mrb[0].mxu0
    %906 = vmatprep.mubr.f32.mxu0 0.0
    %907 = vmatmul.mubr.f32.gmra.mrb[0].mxu0 %v367
    %v908 = vpop.f32.mrb[0].mxu0
    %v909 = vadd.f32 0.0, %v908
    %v910 = vpop.f32.mrb[0].mxu0
    %911 = vmatprep.mubr.f32.mxu0 0.0
    %912 = vmatmul.mubr.f32.gmra.mrb[0].mxu0 %v370
    %v913 = vpop.f32.mrb[0].mxu0
    %v914 = vadd.f32 0.0, %v913
    %v915 = vpop.f32.mrb[0].mxu0
    %916 = vmatprep.mubr.f32.mxu0 0.0
    %917 = vmatmul.mubr.f32.gmra.mrb[0].mxu0 %v373
    %v918 = vpop.f32.mrb[0].mxu0
    %v919 = vadd.f32 0.0, %v918
    %v920 = vpop.f32.mrb[0].mxu0
    %921 = vmatprep.mubr.f32.mxu0 0.0
    %922 = vmatmul.mubr.f32.gmra.mrb[0].mxu0 %v376
    %v923 = vpop.f32.mrb[0].mxu0
    %v924 = vadd.f32 0.0, %v923
    %v925 = vpop.f32.mrb[0].mxu0
    %926 = vmatprep.mubr.f32.mxu0 0.0
    %927 = vmatmul.mubr.f32.gmra.mrb[0].mxu0 %v379
    %v928 = vpop.f32.mrb[0].mxu0
    %v929 = vadd.f32 0.0, %v928
    %v930 = vpop.f32.mrb[0].mxu0
    %931 = vmatprep.mubr.f32.mxu0 0.0
    %932 = vmatmul.mubr.f32.gmra.mrb[0].mxu0 %v382
    %v933 = vpop.f32.mrb[0].mxu0
    %v934 = vadd.f32 0.0, %v933
    %v935 = vpop.f32.mrb[0].mxu0
    %936 = vmatprep.mubr.f32.mxu0 0.0
    %937 = vmatmul.mubr.f32.gmra.mrb[0].mxu0 %v385
    %v938 = vpop.f32.mrb[0].mxu0
    %v939 = vadd.f32 0.0, %v938
    %v940 = vpop.f32.mrb[0].mxu0
    %941 = vmatprep.mubr.f32.mxu0 0.0
    %942 = vmatmul.mubr.f32.gmra.mrb[0].mxu0 %v388
    %v943 = vpop.f32.mrb[0].mxu0
    %v944 = vadd.f32 0.0, %v943
    %v945 = vpop.f32.mrb[0].mxu0
    %946 = vmatprep.mubr.f32.mxu0 0.0
    %947 = vmatmul.mubr.f32.gmra.mrb[0].mxu0 %v391
    %v948 = vpop.f32.mrb[0].mxu0
    %v949 = vadd.f32 0.0, %v948
    %v950 = vpop.f32.mrb[0].mxu0
    %951 = vmatprep.mubr.f32.mxu0 0.0
    %952 = vmatmul.mubr.f32.gmra.mrb[0].mxu0 %v394
    %v953 = vpop.f32.mrb[0].mxu0
    %v954 = vadd.f32 0.0, %v953
    %v955 = vpop.f32.mrb[0].mxu0
    %956 = vmatprep.mubr.f32.mxu0 0.0
    %957 = vmatmul.mubr.f32.gmra.mrb[0].mxu0 %v397
    %v958 = vpop.f32.mrb[0].mxu0
    %v959 = vadd.f32 0.0, %v958
    %v960 = vpop.f32.mrb[0].mxu0
    %961 = vmatprep.mubr.f32.mxu0 0.0
    %962 = vmatmul.mubr.f32.gmra.mrb[0].mxu0 %v400
    %v963 = vpop.f32.mrb[0].mxu0
    %v964 = vadd.f32 0.0, %v963
    %v965 = vpop.f32.mrb[0].mxu0
    %966 = vmatprep.mubr.f32.mxu0 0.0
    %967 = vmatmul.mubr.f32.gmra.mrb[0].mxu0 %v403
    %v968 = vpop.f32.mrb[0].mxu0
    %v969 = vadd.f32 0.0, %v968
    %v970 = vpop.f32.mrb[0].mxu0
    %971 = vmatprep.mubr.f32.mxu0 0.0
    %972 = vmatmul.mubr.f32.gmra.mrb[0].mxu0 %v406
    %v973 = vpop.f32.mrb[0].mxu0
    %v974 = vadd.f32 0.0, %v973
    %v975 = vpop.f32.mrb[0].mxu0
    %976 = vmatprep.mubr.f32.mxu0 0.0
    %977 = vmatmul.mubr.f32.gmra.mrb[0].mxu0 %v409
    %v978 = vpop.f32.mrb[0].mxu0
    %v979 = vadd.f32 0.0, %v978
    %v980 = vpop.f32.mrb[0].mxu0
    %981 = vmatprep.mubr.f32.mxu0 0.0
    %982 = vmatmul.mubr.f32.gmra.mrb[0].mxu0 %v412
    %v983 = vpop.f32.mrb[0].mxu0
    %v984 = vadd.f32 0.0, %v983
    %v985 = vpop.f32.mrb[0].mxu0
    %986 = vmatprep.mubr.f32.mxu0 0.0
    %987 = vmatmul.mubr.f32.gmra.mrb[0].mxu0 %v415
    %v988 = vpop.f32.mrb[0].mxu0
    %v989 = vadd.f32 0.0, %v988
    %v990 = vpop.f32.mrb[0].mxu0
    %991 = vmatprep.mubr.f32.mxu0 0.0
    %992 = vmatmul.mubr.f32.gmra.mrb[0].mxu0 %v418
    %v993 = vpop.f32.mrb[0].mxu0
    %v994 = vadd.f32 0.0, %v993
    %v995 = vpop.f32.mrb[0].mxu0
    %996 = vmatprep.mubr.f32.mxu0 0.0
    %997 = vmatmul.mubr.f32.gmra.mrb[0].mxu0 %v421
    %v998 = vpop.f32.mrb[0].mxu0
    %v999 = vadd.f32 0.0, %v998
    %v1000 = vpop.f32.mrb[0].mxu0
    %1001 = vmatprep.mubr.f32.mxu0 0.0
    %1002 = vmatmul.mubr.f32.gmra.mrb[0].mxu0 %v424
    %v1003 = vpop.f32.mrb[0].mxu0
    %v1004 = vadd.f32 0.0, %v1003
    %v1005 = vpop.f32.mrb[0].mxu0
    %1006 = vmatprep.mubr.f32.mxu0 0.0
    %1007 = vmatmul.mubr.f32.gmra.mrb[0].mxu0 %v427
    %v1008 = vpop.f32.mrb[0].mxu0
    %v1009 = vadd.f32 0.0, %v1008
    %v1010 = vpop.f32.mrb[0].mxu0
    %1011 = vmatprep.mubr.f32.mxu0 0.0
    %1012 = vmatmul.mubr.f32.gmra.mrb[0].mxu0 %v430
    %v1013 = vpop.f32.mrb[0].mxu0
    %v1014 = vadd.f32 0.0, %v1013
    %v1015 = vpop.f32.mrb[0].mxu0
    %1016 = vmatprep.mubr.f32.mxu0 0.0
    %1017 = vmatmul.mubr.f32.gmra.mrb[0].mxu0 %v433
    %v1018 = vpop.f32.mrb[0].mxu0
    %v1019 = vadd.f32 0.0, %v1018
    %v1020 = vpop.f32.mrb[0].mxu0
    %1021 = vmatprep.mubr.f32.mxu0 0.0
    %1022 = vmatmul.mubr.f32.gmra.mrb[0].mxu0 %v436
    %v1023 = vpop.f32.mrb[0].mxu0
    %v1024 = vadd.f32 0.0, %v1023
    %v1025 = vpop.f32.mrb[0].mxu0
    %1026 = vmatprep.mubr.f32.mxu0 0.0
    %1027 = vmatmul.mubr.f32.gmra.mrb[0].mxu0 %v439
    %v1028 = vpop.f32.mrb[0].mxu0
    %v1029 = vadd.f32 0.0, %v1028
    %v1030 = vpop.f32.mrb[0].mxu0
    %1031 = vmatprep.mubr.f32.mxu0 0.0
    %1032 = vmatmul.mubr.f32.gmra.mrb[0].mxu0 %v442
    %v1033 = vpop.f32.mrb[0].mxu0
    %v1034 = vadd.f32 0.0, %v1033
    %v1035 = vpop.f32.mrb[0].mxu0
    %1036 = vmatprep.mubr.f32.mxu0 0.0
    %1037 = vmatmul.mubr.f32.gmra.mrb[0].mxu0 %v445
    %v1038 = vpop.f32.mrb[0].mxu0
    %v1039 = vadd.f32 0.0, %v1038
    %v1040 = vpop.f32.mrb[0].mxu0
    %1041 = vmatprep.mubr.f32.mxu0 0.0
    %1042 = vmatmul.mubr.f32.gmra.mrb[0].mxu0 %v448
    %v1043 = vpop.f32.mrb[0].mxu0
    %v1044 = vadd.f32 0.0, %v1043
    %v1045 = vpop.f32.mrb[0].mxu0
    %1046 = vmatprep.mubr.f32.mxu0 0.0
    %1047 = vmatmul.mubr.f32.gmra.mrb[0].mxu0 %v451
    %v1048 = vpop.f32.mrb[0].mxu0
    %v1049 = vadd.f32 0.0, %v1048
    %v1050 = vpop.f32.mrb[0].mxu0
    %1051 = vmatprep.mubr.f32.mxu0 0.0
    %1052 = vmatmul.mubr.f32.gmra.mrb[0].mxu0 %v454
    %v1053 = vpop.f32.mrb[0].mxu0
    %v1054 = vadd.f32 0.0, %v1053
    %v1055 = vpop.f32.mrb[0].mxu0
    %1056 = vmatprep.mubr.f32.mxu0 0.0
    %1057 = vmatmul.mubr.f32.gmra.mrb[0].mxu0 %v457
    %v1058 = vpop.f32.mrb[0].mxu0
    %v1059 = vadd.f32 0.0, %v1058
    %v1060 = vpop.f32.mrb[0].mxu0
    %1061 = vmatprep.mubr.f32.mxu0 0.0
    %1062 = vmatmul.mubr.f32.gmra.mrb[0].mxu0 %v460
    %v1063 = vpop.f32.mrb[0].mxu0
    %v1064 = vadd.f32 0.0, %v1063
    %v1065 = vpop.f32.mrb[0].mxu0
    %1066 = vmatprep.mubr.f32.mxu0 0.0
    %1067 = vmatmul.mubr.f32.gmra.mrb[0].mxu0 %v463
    %v1068 = vpop.f32.mrb[0].mxu0
    %v1069 = vadd.f32 0.0, %v1068
    %v1070 = vpop.f32.mrb[0].mxu0
    %1071 = vmatprep.mubr.f32.mxu0 0.0
    %1072 = vmatmul.mubr.f32.gmra.mrb[0].mxu0 %v466
    %v1073 = vpop.f32.mrb[0].mxu0
    %v1074 = vadd.f32 0.0, %v1073
    %v1075 = vpop.f32.mrb[0].mxu0
    %1076 = vmatprep.mubr.f32.mxu0 0.0
    %1077 = vmatmul.mubr.f32.gmra.mrb[0].mxu0 %v469
    %v1078 = vpop.f32.mrb[0].mxu0
    %v1079 = vadd.f32 0.0, %v1078
    %v1080 = vpop.f32.mrb[0].mxu0
    %1081 = vmatprep.mubr.f32.mxu0 0.0
    %1082 = vmatmul.mubr.f32.gmra.mrb[0].mxu0 %v472
    %v1083 = vpop.f32.mrb[0].mxu0
    %v1084 = vadd.f32 0.0, %v1083
    %v1085 = vpop.f32.mrb[0].mxu0
    %1086 = vmatprep.mubr.f32.mxu0 0.0
    %1087 = vmatmul.mubr.f32.gmra.mrb[0].mxu0 %v475
    %v1088 = vpop.f32.mrb[0].mxu0
    %v1089 = vadd.f32 0.0, %v1088
    %v1090 = vpop.f32.mrb[0].mxu0
    %1091 = vmatprep.mubr.f32.mxu0 0.0
    %1092 = vmatmul.mubr.f32.gmra.mrb[0].mxu0 %v478
    %v1093 = vpop.f32.mrb[0].mxu0
    %v1094 = vadd.f32 0.0, %v1093
    %v1095 = vpop.f32.mrb[0].mxu0
    %1096 = vmatprep.mubr.f32.mxu0 0.0
    %1097 = vmatmul.mubr.f32.gmra.mrb[0].mxu0 %v481
    %v1098 = vpop.f32.mrb[0].mxu0
    %v1099 = vadd.f32 0.0, %v1098
    %v1100 = vpop.f32.mrb[0].mxu0
    %1101 = vmatprep.mubr.f32.mxu0 0.0
    %1102 = vmatmul.mubr.f32.gmra.mrb[0].mxu0 %v484
    %v1103 = vpop.f32.mrb[0].mxu0
    %v1104 = vadd.f32 0.0, %v1103
    %v1105 = vpop.f32.mrb[0].mxu0
    %1106 = vmatprep.mubr.f32.mxu0 0.0
    %1107 = vmatmul.mubr.f32.gmra.mrb[0].mxu0 %v487
    %v1108 = vpop.f32.mrb[0].mxu0
    %v1109 = vadd.f32 0.0, %v1108
    %v1110 = vpop.f32.mrb[0].mxu0
    %1111 = vmatprep.mubr.f32.mxu0 0.0
    %1112 = vmatmul.mubr.f32.gmra.mrb[0].mxu0 %v490
    %v1113 = vpop.f32.mrb[0].mxu0
    %v1114 = vadd.f32 0.0, %v1113
    %v1115 = vpop.f32.mrb[0].mxu0
    %1116 = vdwg.mxu0
    %v1117 = vmax.f32 %v559, %v594
    %v1118 = vmax.f32 %v564, %v599
    %v1119 = vmax.f32 %v569, %v604
    %v1120 = vmax.f32 %v574, %v609
    %v1121 = vmax.f32 %v579, %v614
    %v1122 = vmax.f32 %v584, %v619
    %v1123 = vmax.f32 %v589, %v624
    %v1124 = vmax.f32 %v1117, %v629
    %v1125 = vmax.f32 %v1118, %v634
    %v1126 = vmax.f32 %v1119, %v639
    %v1127 = vmax.f32 %v1120, %v644
    %v1128 = vmax.f32 %v1121, %v649
    %v1129 = vmax.f32 %v1122, %v654
    %v1130 = vmax.f32 %v1123, %v659
    %v1131 = vmax.f32 %v1124, %v664
    %v1132 = vmax.f32 %v1125, %v669
    %v1133 = vmax.f32 %v1126, %v674
    %v1134 = vmax.f32 %v1127, %v679
    %v1135 = vmax.f32 %v1128, %v684
    %v1136 = vmax.f32 %v1129, %v689
    %v1137 = vmax.f32 %v1130, %v694
    %v1138 = vmax.f32 %v1131, %v699
    %v1139 = vmax.f32 %v1132, %v704
    %v1140 = vmax.f32 %v1133, %v709
    %v1141 = vmax.f32 %v1134, %v714
    %v1142 = vmax.f32 %v1135, %v719
    %v1143 = vmax.f32 %v1136, %v724
    %v1144 = vmax.f32 %v1137, %v729
    %v1145 = vmax.f32 %v1138, %v734
    %v1146 = vmax.f32 %v1139, %v739
    %v1147 = vmax.f32 %v1140, %v744
    %v1148 = vmax.f32 %v1141, %v749
    %v1149 = vmax.f32 %v1142, %v754
    %v1150 = vmax.f32 %v1143, %v759
    %v1151 = vmax.f32 %v1144, %v764
    %v1152 = vmax.f32 %v1145, %v769
    %v1153 = vmax.f32 %v1146, %v774
    %v1154 = vmax.f32 %v1147, %v779
    %v1155 = vmax.f32 %v1148, %v784
    %v1156 = vmax.f32 %v1149, %v789
    %v1157 = vmax.f32 %v1150, %v794
    %v1158 = vmax.f32 %v1151, %v799
    %v1159 = vmax.f32 %v1152, %v804
    %v1160 = vmax.f32 %v1153, %v809
    %v1161 = vmax.f32 %v1154, %v814
    %v1162 = vmax.f32 %v1155, %v819
    %v1163 = vmax.f32 %v1156, %v824
    %v1164 = vmax.f32 %v1157, %v829
    %v1165 = vmax.f32 %v1158, %v834
    %v1166 = vmax.f32 %v1159, %v839
    %v1167 = vmax.f32 %v1160, %v844
    %v1168 = vmax.f32 %v1161, %v849
    %v1169 = vmax.f32 %v1162, %v854
    %v1170 = vmax.f32 %v1163, %v859
    %v1171 = vmax.f32 %v1164, %v864
    %v1172 = vmax.f32 %v1165, %v869
    %v1173 = vmax.f32 %v1166, %v874
    %v1174 = vmax.f32 %v1167, %v879
    %v1175 = vmax.f32 %v1168, %v884
    %v1176 = vmax.f32 %v1169, %v889
    %v1177 = vmax.f32 %v1170, %v894
    %v1178 = vmax.f32 %v1171, %v899
    %v1179 = vmax.f32 %v1172, %v904
    %v1180 = vmax.f32 %v1173, %v909
    %v1181 = vmax.f32 %v1174, %v914
    %v1182 = vmax.f32 %v1175, %v919
    %v1183 = vmax.f32 %v1176, %v924
    %v1184 = vmax.f32 %v1177, %v929
    %v1185 = vmax.f32 %v1178, %v934
    %v1186 = vmax.f32 %v1179, %v939
    %v1187 = vmax.f32 %v1180, %v944
    %v1188 = vmax.f32 %v1181, %v949
    %v1189 = vmax.f32 %v1182, %v954
    %v1190 = vmax.f32 %v1183, %v959
    %v1191 = vmax.f32 %v1184, %v964
    %v1192 = vmax.f32 %v1185, %v969
    %v1193 = vmax.f32 %v1186, %v974
    %v1194 = vmax.f32 %v1187, %v979
    %v1195 = vmax.f32 %v1188, %v984
    %v1196 = vmax.f32 %v1189, %v989
    %v1197 = vmax.f32 %v1190, %v994
    %v1198 = vmax.f32 %v1191, %v999
    %v1199 = vmax.f32 %v1192, %v1004
    %v1200 = vmax.f32 %v1193, %v1009
    %v1201 = vmax.f32 %v1194, %v1014
    %v1202 = vmax.f32 %v1195, %v1019
    %v1203 = vmax.f32 %v1196, %v1024
    %v1204 = vmax.f32 %v1197, %v1029
    %v1205 = vmax.f32 %v1198, %v1034
    %v1206 = vmax.f32 %v1199, %v1039
    %v1207 = vmax.f32 %v1200, %v1044
    %v1208 = vmax.f32 %v1201, %v1049
    %v1209 = vmax.f32 %v1202, %v1054
    %v1210 = vmax.f32 %v1203, %v1059
    %v1211 = vmax.f32 %v1204, %v1064
    %v1212 = vmax.f32 %v1205, %v1069
    %v1213 = vmax.f32 %v1206, %v1074
    %v1214 = vmax.f32 %v1207, %v1079
    %v1215 = vmax.f32 %v1208, %v1084
    %v1216 = vmax.f32 %v1209, %v1089
    %v1217 = vmax.f32 %v1210, %v1094
    %v1218 = vmax.f32 %v1211, %v1099
    %v1219 = vmax.f32 %v1212, %v1104
    %v1220 = vmax.f32 %v1213, %v1109
    %v1221 = vmax.f32 %v1214, %v1114
    %v1222 = vld [vmem:[%s2] sm:$0x1]
    %v1224 = vlaneseq
    %v1225 = vshrl.u32 %v1224, 7
    %v1226 = vsub.s32 0, %v1225
    %v1227 = vrot.slane %v1222, %v1226
    %v1229 = vadd.f32 %v1215, %v1227
    %v1230 = vadd.f32 %v1216, %v1227
    %v1231 = vadd.f32 %v1217, %v1227
    %v1232 = vadd.f32 %v1218, %v1227
    %v1233 = vadd.f32 %v1219, %v1227
    %v1234 = vadd.f32 %v1220, %v1227
    %v1235 = vadd.f32 %v1221, %v1227
    %v1236 = vmax.f32 %v1229, 0.0
    %v1237 = vmax.f32 %v1230, 0.0
    %v1238 = vmax.f32 %v1231, 0.0
    %v1239 = vmax.f32 %v1232, 0.0
    %v1240 = vmax.f32 %v1233, 0.0
    %v1241 = vmax.f32 %v1234, 0.0
    %v1242 = vmax.f32 %v1235, 0.0
    %v1244 = vrot.slane %v1236, 2
    %1245 = vrot.lane.b32.xlu0 %v1244, 32
    %v1246 = vpop.permute.xlu0 %1245
    %v1248 = vrot.slane %v1236, 4
    %1249 = vrot.lane.b32.xlu0 %v1248, 64
    %v1250 = vpop.permute.xlu0 %1249
    %vm1253 = vcmask 1041408
    %v1254 = vrot.slane %v1236, 6
    %v1255 = vrot.slane %v1237, 6
    %v1256 = vsel %vm1253, %v1254, %v1255
    %1257 = vrot.lane.b32.xlu0 %v1256, 96
    %v1258 = vpop.permute.xlu0 %1257
    %v1260 = vrot.slane %v1237, 2
    %v1262 = vrot.slane %v1237, 4
    %1263 = vrot.lane.b32.xlu0 %v1262, 32
    %v1264 = vpop.permute.xlu0 %1263
    %v1267 = vrot.slane %v1238, 6
    %v1268 = vsel %vm1253, %v1255, %v1267
    %1269 = vrot.lane.b32.xlu0 %v1268, 64
    %v1270 = vpop.permute.xlu0 %1269
    %1272 = vrot.lane.b32.xlu0 %v1238, 96
    %v1273 = vpop.permute.xlu0 %1272
    %v1275 = vrot.slane %v1238, 4
    %v1278 = vrot.slane %v1239, 6
    %v1279 = vsel %vm1253, %v1267, %v1278
    %1280 = vrot.lane.b32.xlu0 %v1279, 32
    %v1281 = vpop.permute.xlu0 %1280
    %1283 = vrot.lane.b32.xlu0 %v1239, 64
    %v1284 = vpop.permute.xlu0 %1283
    %v1286 = vrot.slane %v1239, 2
    %1287 = vrot.lane.b32.xlu0 %v1286, 96
    %v1288 = vpop.permute.xlu0 %1287
    %v1291 = vrot.slane %v1240, 6
    %v1292 = vsel %vm1253, %v1278, %v1291
    %1294 = vrot.lane.b32.xlu0 %v1240, 32
    %v1295 = vpop.permute.xlu0 %1294
    %v1297 = vrot.slane %v1240, 2
    %1298 = vrot.lane.b32.xlu0 %v1297, 64
    %v1299 = vpop.permute.xlu0 %1298
    %v1301 = vrot.slane %v1240, 4
    %1302 = vrot.lane.b32.xlu0 %v1301, 96
    %v1303 = vpop.permute.xlu0 %1302
    %vm1305 = vcmask 261120
    %v1306 = vsel %vm1305, %v1236, %v1246
    %vm1307 = vcmask 523264
    %v1308 = vsel %vm1307, %v1306, %v1250
    %vm1309 = vcmask 785408
    %v1310 = vsel %vm1309, %v1308, %v1258
    %v1311 = vsel %vm1305, %v1260, %v1264
    %v1312 = vsel %vm1307, %v1311, %v1270
    %v1313 = vsel %vm1309, %v1312, %v1273
    %v1314 = vsel %vm1305, %v1275, %v1281
    %v1315 = vsel %vm1307, %v1314, %v1284
    %v1316 = vsel %vm1309, %v1315, %v1288
    %v1317 = vsel %vm1305, %v1292, %v1295
    %v1318 = vsel %vm1307, %v1317, %v1299
    %v1319 = vsel %vm1309, %v1318, %v1303
    %1320 = vrot.lane.b32.xlu0 %v1260, 32
    %v1321 = vpop.permute.xlu0 %1320
    %vm1323 = vcmask 1043456
    %v1324 = vsel %vm1323, %v1262, %v1275
    %1325 = vrot.lane.b32.xlu0 %v1324, 64
    %v1326 = vpop.permute.xlu0 %1325
    %1328 = vrot.lane.b32.xlu0 %v1267, 96
    %v1329 = vpop.permute.xlu0 %1328
    %v1331 = vrot.slane %v1238, 2
    %v1333 = vrot.slane %v1239, 4
    %v1334 = vsel %vm1323, %v1275, %v1333
    %1335 = vrot.lane.b32.xlu0 %v1334, 32
    %v1336 = vpop.permute.xlu0 %1335
    %1338 = vrot.lane.b32.xlu0 %v1278, 64
    %v1339 = vpop.permute.xlu0 %1338
    %1341 = vrot.lane.b32.xlu0 %v1239, 96
    %v1342 = vpop.permute.xlu0 %1341
    %v1344 = vsel %vm1323, %v1333, %v1301
    %1346 = vrot.lane.b32.xlu0 %v1291, 32
    %v1347 = vpop.permute.xlu0 %1346
    %1349 = vrot.lane.b32.xlu0 %v1240, 64
    %v1350 = vpop.permute.xlu0 %1349
    %1352 = vrot.lane.b32.xlu0 %v1297, 96
    %v1353 = vpop.permute.xlu0 %1352
    %v1356 = vrot.slane %v1241, 6
    %1358 = vrot.lane.b32.xlu0 %v1241, 32
    %v1359 = vpop.permute.xlu0 %1358
    %v1361 = vrot.slane %v1241, 2
    %1362 = vrot.lane.b32.xlu0 %v1361, 64
    %v1363 = vpop.permute.xlu0 %1362
    %v1366 = vrot.slane %v1241, 4
    %v1367 = vrot.slane %v1242, 4
    %v1368 = vsel %vm1323, %v1366, %v1367
    %1369 = vrot.lane.b32.xlu0 %v1368, 96
    %v1370 = vpop.permute.xlu0 %1369
    %v1372 = vsel %vm1305, %v1237, %v1321
    %v1373 = vsel %vm1307, %v1372, %v1326
    %v1374 = vsel %vm1309, %v1373, %v1329
    %v1375 = vsel %vm1305, %v1331, %v1336
    %v1376 = vsel %vm1307, %v1375, %v1339
    %v1377 = vsel %vm1309, %v1376, %v1342
    %v1378 = vsel %vm1305, %v1344, %v1347
    %v1379 = vsel %vm1307, %v1378, %v1350
    %v1380 = vsel %vm1309, %v1379, %v1353
    %v1381 = vsel %vm1305, %v1356, %v1359
    %v1382 = vsel %vm1307, %v1381, %v1363
    %v1383 = vsel %vm1309, %v1382, %v1370
    %v1388 = vrot.slane %v1374, 6
    %v1389 = vrot.slane %v1377, 6
    %v1390 = vrot.slane %v1380, 6
    %v1391 = vrot.slane %v1383, 6
    %v1396 = vsel %vm1323, %v1310, %v1388
    %v1397 = vsel %vm1323, %v1313, %v1389
    %v1398 = vsel %vm1323, %v1316, %v1390
    %v1399 = vsel %vm1323, %v1319, %v1391
    %v1400 = vld [vmem:[%s3] sm:$0xff]
    %v1401 = vld [vmem:[%s3 + $0x8] sm:$0xff]
    %v1402 = vld [vmem:[%s3 + $0x10] sm:$0xff]
    %v1403 = vld [vmem:[%s3 + $0x18] sm:$0xff]
    %v1404 = vld [vmem:[%s3 + $0x20] sm:$0xff]
    %v1405 = vld [vmem:[%s3 + $0x28] sm:$0xff]
    %v1406 = vld [vmem:[%s3 + $0x30] sm:$0xff]
    %v1407 = vld [vmem:[%s3 + $0x38] sm:$0xff]
    %v1408 = vld [vmem:[%s3 + $0x40] sm:$0xff]
    %v1409 = vld [vmem:[%s3 + $0x48] sm:$0xff]
    %v1410 = vld [vmem:[%s3 + $0x50] sm:$0xff]
    %v1411 = vld [vmem:[%s3 + $0x58] sm:$0xff]
    %v1412 = vld [vmem:[%s3 + $0x60] sm:$0xff]
    %v1413 = vld [vmem:[%s3 + $0x68] sm:$0xff]
    %v1414 = vld [vmem:[%s3 + $0x70] sm:$0xff]
    %v1415 = vld [vmem:[%s3 + $0x78] sm:$0xff]
    %v1416 = vld [vmem:[%s3 + $0x80] sm:$0xff]
    %v1417 = vld [vmem:[%s3 + $0x88] sm:$0xff]
    %v1418 = vld [vmem:[%s3 + $0x90] sm:$0xff]
    %v1419 = vld [vmem:[%s3 + $0x98] sm:$0xff]
    %v1420 = vld [vmem:[%s3 + $0xa0] sm:$0xff]
    %v1421 = vld [vmem:[%s3 + $0xa8] sm:$0xff]
    %v1422 = vld [vmem:[%s3 + $0xb0] sm:$0xff]
    %v1423 = vld [vmem:[%s3 + $0xb8] sm:$0xff]
    %v1424 = vld [vmem:[%s3 + $0xc0] sm:$0xff]
    %v1425 = vld [vmem:[%s3 + $0xc8] sm:$0xff]
    %v1426 = vld [vmem:[%s3 + $0xd0] sm:$0xff]
    %v1427 = vld [vmem:[%s3 + $0xd8] sm:$0xff]
    %v1428 = vld [vmem:[%s3 + $0xe0] sm:$0xff]
    %v1429 = vld [vmem:[%s3 + $0xe8] sm:$0xff]
    %v1430 = vld [vmem:[%s3 + $0xf0] sm:$0xff]
    %v1431 = vld [vmem:[%s3 + $0xf8] sm:$0xff]
    %v1432 = vld [vmem:[%s3 + $0x100] sm:$0xff]
    %v1433 = vld [vmem:[%s3 + $0x108] sm:$0xff]
    %v1434 = vld [vmem:[%s3 + $0x110] sm:$0xff]
    %v1435 = vld [vmem:[%s3 + $0x118] sm:$0xff]
    %v1436 = vld [vmem:[%s3 + $0x120] sm:$0xff]
    %v1437 = vld [vmem:[%s3 + $0x128] sm:$0xff]
    %v1438 = vld [vmem:[%s3 + $0x130] sm:$0xff]
    %v1439 = vld [vmem:[%s3 + $0x138] sm:$0xff]
    %v1440 = vld [vmem:[%s3 + $0x140] sm:$0xff]
    %v1441 = vld [vmem:[%s3 + $0x148] sm:$0xff]
    %v1442 = vld [vmem:[%s3 + $0x150] sm:$0xff]
    %v1443 = vld [vmem:[%s3 + $0x158] sm:$0xff]
    %v1444 = vld [vmem:[%s3 + $0x160] sm:$0xff]
    %v1445 = vld [vmem:[%s3 + $0x168] sm:$0xff]
    %v1446 = vld [vmem:[%s3 + $0x170] sm:$0xff]
    %v1447 = vld [vmem:[%s3 + $0x178] sm:$0xff]
    %v1448 = vld [vmem:[%s3 + $0x180] sm:$0xff]
    %v1449 = vld [vmem:[%s3 + $0x188] sm:$0xff]
    %v1450 = vld [vmem:[%s3 + $0x190] sm:$0xff]
    %v1451 = vld [vmem:[%s3 + $0x198] sm:$0xff]
    %v1452 = vld [vmem:[%s3 + $0x1a0] sm:$0xff]
    %v1453 = vld [vmem:[%s3 + $0x1a8] sm:$0xff]
    %v1454 = vld [vmem:[%s3 + $0x1b0] sm:$0xff]
    %v1455 = vld [vmem:[%s3 + $0x1b8] sm:$0xff]
    %v1456 = vld [vmem:[%s3 + $0x1c0] sm:$0xff]
    %v1457 = vld [vmem:[%s3 + $0x1c8] sm:$0xff]
    %v1458 = vld [vmem:[%s3 + $0x1d0] sm:$0xff]
    %v1459 = vld [vmem:[%s3 + $0x1d8] sm:$0xff]
    %v1460 = vld [vmem:[%s3 + $0x1e0] sm:$0xff]
    %v1461 = vld [vmem:[%s3 + $0x1e8] sm:$0xff]
    %v1462 = vld [vmem:[%s3 + $0x1f0] sm:$0xff]
    %v1463 = vld [vmem:[%s3 + $0x1f8] sm:$0xff]
    %v1464 = vld [vmem:[%s4] sm:$0x1]
    %v1466 = vlaneseq
    %v1467 = vshrl.u32 %v1466, 7
    %v1468 = vsub.s32 0, %v1467
    %v1469 = vrot.slane %v1464, %v1468
    %1471 = vmatprep.subr.mxu0 0.0
    %1472 = vmatpush1.msra.mxu0 %v1400
    %1473 = vmatprep.subr.mxu0 0.0
    %1474 = vmatpush1.msra.mxu0 %v1401
    %1475 = vmatprep.subr.mxu0 0.0
    %1476 = vmatpush1.msra.mxu0 %v1402
    %1477 = vmatprep.subr.mxu0 0.0
    %1478 = vmatpush1.msra.mxu0 %v1403
    %1479 = vmatprep.subr.mxu0 0.0
    %1480 = vmatpush1.msra.mxu0 %v1404
    %1481 = vmatprep.subr.mxu0 0.0
    %1482 = vmatpush1.msra.mxu0 %v1405
    %1483 = vmatprep.subr.mxu0 0.0
    %1484 = vmatpush1.msra.mxu0 %v1406
    %1485 = vmatprep.subr.mxu0 0.0
    %1486 = vmatpush1.msra.mxu0 %v1407
    %1487 = vmatprep.subr.mxu0 0.0
    %1488 = vmatpush1.msra.mxu0 %v1408
    %1489 = vmatprep.subr.mxu0 0.0
    %1490 = vmatpush1.msra.mxu0 %v1409
    %1491 = vmatprep.subr.mxu0 0.0
    %1492 = vmatpush1.msra.mxu0 %v1410
    %1493 = vmatprep.subr.mxu0 0.0
    %1494 = vmatpush1.msra.mxu0 %v1411
    %1495 = vmatprep.subr.mxu0 0.0
    %1496 = vmatpush1.msra.mxu0 %v1412
    %1497 = vmatprep.subr.mxu0 0.0
    %1498 = vmatpush1.msra.mxu0 %v1413
    %1499 = vmatprep.subr.mxu0 0.0
    %1500 = vmatpush1.msra.mxu0 %v1414
    %1501 = vmatprep.subr.mxu0 0.0
    %1502 = vmatpush1.msra.mxu0 %v1415
    %1503 = vmatprep.subr.mxu0 0.0
    %1504 = vmatpush1.msra.mxu0 %v1416
    %1505 = vmatprep.subr.mxu0 0.0
    %1506 = vmatpush1.msra.mxu0 %v1417
    %1507 = vmatprep.subr.mxu0 0.0
    %1508 = vmatpush1.msra.mxu0 %v1418
    %1509 = vmatprep.subr.mxu0 0.0
    %1510 = vmatpush1.msra.mxu0 %v1419
    %1511 = vmatprep.subr.mxu0 0.0
    %1512 = vmatpush1.msra.mxu0 %v1420
    %1513 = vmatprep.subr.mxu0 0.0
    %1514 = vmatpush1.msra.mxu0 %v1421
    %1515 = vmatprep.subr.mxu0 0.0
    %1516 = vmatpush1.msra.mxu0 %v1422
    %1517 = vmatprep.subr.mxu0 0.0
    %1518 = vmatpush1.msra.mxu0 %v1423
    %1519 = vmatprep.subr.mxu0 0.0
    %1520 = vmatpush1.msra.mxu0 %v1424
    %1521 = vmatprep.subr.mxu0 0.0
    %1522 = vmatpush1.msra.mxu0 %v1425
    %1523 = vmatprep.subr.mxu0 0.0
    %1524 = vmatpush1.msra.mxu0 %v1426
    %1525 = vmatprep.subr.mxu0 0.0
    %1526 = vmatpush1.msra.mxu0 %v1427
    %1527 = vmatprep.subr.mxu0 0.0
    %1528 = vmatpush1.msra.mxu0 %v1428
    %1529 = vmatprep.subr.mxu0 0.0
    %1530 = vmatpush1.msra.mxu0 %v1429
    %1531 = vmatprep.subr.mxu0 0.0
    %1532 = vmatpush1.msra.mxu0 %v1430
    %1533 = vmatprep.subr.mxu0 0.0
    %1534 = vmatpush1.msra.mxu0 %v1431
    %1535 = vmatprep.mubr.f32.mxu0 %v1397
    %1536 = vmatmul.mubr.f32.gmra.mrb[0].mxu0 %v1396
    %v1537 = vpop.f32.mrb[0].mxu0
    %v1538 = vadd.f32 %v1469, %v1537
    %v1539 = vpop.f32.mrb[0].mxu0
    %1540 = vdwg.mxu0
    %1541 = vmatprep.subr.mxu0 0.0
    %1542 = vmatpush1.msra.mxu0 %v1432
    %1543 = vmatprep.subr.mxu0 0.0
    %1544 = vmatpush1.msra.mxu0 %v1433
    %1545 = vmatprep.subr.mxu0 0.0
    %1546 = vmatpush1.msra.mxu0 %v1434
    %1547 = vmatprep.subr.mxu0 0.0
    %1548 = vmatpush1.msra.mxu0 %v1435
    %1549 = vmatprep.subr.mxu0 0.0
    %1550 = vmatpush1.msra.mxu0 %v1436
    %1551 = vmatprep.subr.mxu0 0.0
    %1552 = vmatpush1.msra.mxu0 %v1437
    %1553 = vmatprep.subr.mxu0 0.0
    %1554 = vmatpush1.msra.mxu0 %v1438
    %1555 = vmatprep.subr.mxu0 0.0
    %1556 = vmatpush1.msra.mxu0 %v1439
    %1557 = vmatprep.subr.mxu0 0.0
    %1558 = vmatpush1.msra.mxu0 %v1440
    %1559 = vmatprep.subr.mxu0 0.0
    %1560 = vmatpush1.msra.mxu0 %v1441
    %1561 = vmatprep.subr.mxu0 0.0
    %1562 = vmatpush1.msra.mxu0 %v1442
    %1563 = vmatprep.subr.mxu0 0.0
    %1564 = vmatpush1.msra.mxu0 %v1443
    %1565 = vmatprep.subr.mxu0 0.0
    %1566 = vmatpush1.msra.mxu0 %v1444
    %1567 = vmatprep.subr.mxu0 0.0
    %1568 = vmatpush1.msra.mxu0 %v1445
    %1569 = vmatprep.subr.mxu0 0.0
    %1570 = vmatpush1.msra.mxu0 %v1446
    %1571 = vmatprep.subr.mxu0 0.0
    %1572 = vmatpush1.msra.mxu0 %v1447
    %1573 = vmatprep.subr.mxu0 0.0
    %1574 = vmatpush1.msra.mxu0 %v1448
    %1575 = vmatprep.subr.mxu0 0.0
    %1576 = vmatpush1.msra.mxu0 %v1449
    %1577 = vmatprep.subr.mxu0 0.0
    %1578 = vmatpush1.msra.mxu0 %v1450
    %1579 = vmatprep.subr.mxu0 0.0
    %1580 = vmatpush1.msra.mxu0 %v1451
    %1581 = vmatprep.subr.mxu0 0.0
    %1582 = vmatpush1.msra.mxu0 %v1452
    %1583 = vmatprep.subr.mxu0 0.0
    %1584 = vmatpush1.msra.mxu0 %v1453
    %1585 = vmatprep.subr.mxu0 0.0
    %1586 = vmatpush1.msra.mxu0 %v1454
    %1587 = vmatprep.subr.mxu0 0.0
    %1588 = vmatpush1.msra.mxu0 %v1455
    %1589 = vmatprep.subr.mxu0 0.0
    %1590 = vmatpush1.msra.mxu0 %v1456
    %1591 = vmatprep.subr.mxu0 0.0
    %1592 = vmatpush1.msra.mxu0 %v1457
    %1593 = vmatprep.subr.mxu0 0.0
    %1594 = vmatpush1.msra.mxu0 %v1458
    %1595 = vmatprep.subr.mxu0 0.0
    %1596 = vmatpush1.msra.mxu0 %v1459
    %1597 = vmatprep.subr.mxu0 0.0
    %1598 = vmatpush1.msra.mxu0 %v1460
    %1599 = vmatprep.subr.mxu0 0.0
    %1600 = vmatpush1.msra.mxu0 %v1461
    %1601 = vmatprep.subr.mxu0 0.0
    %1602 = vmatpush1.msra.mxu0 %v1462
    %1603 = vmatprep.subr.mxu0 0.0
    %1604 = vmatpush1.msra.mxu0 %v1463
    %1605 = vmatprep.mubr.f32.mxu0 %v1399
    %1606 = vmatmul.mubr.f32.gmra.mrb[0].mxu0 %v1398
    %v1607 = vpop.f32.mrb[0].mxu0
    %v1608 = vadd.f32 %v1538, %v1607
    %v1609 = vpop.f32.mrb[0].mxu0
    %1610 = vdwg.mxu0
    %v1611 = vmax.f32 %v1608, 0.0
    %v1613 = vrot.slane %v1611, 2
    %v1615 = vmax.f32 %v1611, %v1613
    %v1616 = vrot.slane %v1611, 4
    %v1618 = vmax.f32 %v1615, %v1616
    %v1619 = vrot.slane %v1611, 6
    %v1621 = vmax.f32 %v1618, %v1619
    %v1622 = vld [vmem:[%s5] sm:$0xff]
    %v1623 = vld [vmem:[%s5 + $0x8] sm:$0xff]
    %v1624 = vld [vmem:[%s5 + $0x10] sm:$0xff]
    %v1625 = vld [vmem:[%s5 + $0x18] sm:$0xff]
    %v1626 = vld [vmem:[%s5 + $0x20] sm:$0xff]
    %v1627 = vld [vmem:[%s5 + $0x28] sm:$0xff]
    %v1628 = vld [vmem:[%s5 + $0x30] sm:$0xff]
    %v1629 = vld [vmem:[%s5 + $0x38] sm:$0xff]
    %v1630 = vld [vmem:[%s5 + $0x40] sm:$0xff]
    %v1631 = vld [vmem:[%s5 + $0x48] sm:$0xff]
    %v1632 = vld [vmem:[%s5 + $0x50] sm:$0xff]
    %v1633 = vld [vmem:[%s5 + $0x58] sm:$0xff]
    %v1634 = vld [vmem:[%s5 + $0x60] sm:$0xff]
    %v1635 = vld [vmem:[%s5 + $0x68] sm:$0xff]
    %v1636 = vld [vmem:[%s5 + $0x70] sm:$0xff]
    %v1637 = vld [vmem:[%s5 + $0x78] sm:$0xff]
    %v1638 = vld [vmem:[%s6] sm:$0x1]
    %v1640 = vlaneseq
    %v1641 = vshrl.u32 %v1640, 7
    %v1642 = vsub.s32 0, %v1641
    %v1643 = vrot.slane %v1638, %v1642
    %1645 = vmatprep.subr.mxu0 0.0
    %1646 = vmatpush1.msra.mxu0 %v1622
    %1647 = vmatprep.subr.mxu0 0.0
    %1648 = vmatpush1.msra.mxu0 %v1623
    %1649 = vmatprep.subr.mxu0 0.0
    %1650 = vmatpush1.msra.mxu0 %v1624
    %1651 = vmatprep.subr.mxu0 0.0
    %1652 = vmatpush1.msra.mxu0 %v1625
    %1653 = vmatprep.subr.mxu0 0.0
    %1654 = vmatpush1.msra.mxu0 %v1626
    %1655 = vmatprep.subr.mxu0 0.0
    %1656 = vmatpush1.msra.mxu0 %v1627
    %1657 = vmatprep.subr.mxu0 0.0
    %1658 = vmatpush1.msra.mxu0 %v1628
    %1659 = vmatprep.subr.mxu0 0.0
    %1660 = vmatpush1.msra.mxu0 %v1629
    %1661 = vmatprep.subr.mxu0 0.0
    %1662 = vmatpush1.msra.mxu0 %v1630
    %1663 = vmatprep.subr.mxu0 0.0
    %1664 = vmatpush1.msra.mxu0 %v1631
    %1665 = vmatprep.subr.mxu0 0.0
    %1666 = vmatpush1.msra.mxu0 %v1632
    %1667 = vmatprep.subr.mxu0 0.0
    %1668 = vmatpush1.msra.mxu0 %v1633
    %1669 = vmatprep.subr.mxu0 0.0
    %1670 = vmatpush1.msra.mxu0 %v1634
    %1671 = vmatprep.subr.mxu0 0.0
    %1672 = vmatpush1.msra.mxu0 %v1635
    %1673 = vmatprep.subr.mxu0 0.0
    %1674 = vmatpush1.msra.mxu0 %v1636
    %1675 = vmatprep.subr.mxu0 0.0
    %1676 = vmatpush1.msra.mxu0 %v1637
    %1677 = vmatprep.subr.mxu0 0.0
    %1678 = vmatpush1.msra.mxu0 0.0
    %1679 = vmatprep.subr.mxu0 0.0
    %1680 = vmatpush1.msra.mxu0 0.0
    %1681 = vmatprep.subr.mxu0 0.0
    %1682 = vmatpush1.msra.mxu0 0.0
    %1683 = vmatprep.subr.mxu0 0.0
    %1684 = vmatpush1.msra.mxu0 0.0
    %1685 = vmatprep.subr.mxu0 0.0
    %1686 = vmatpush1.msra.mxu0 0.0
    %1687 = vmatprep.subr.mxu0 0.0
    %1688 = vmatpush1.msra.mxu0 0.0
    %1689 = vmatprep.subr.mxu0 0.0
    %1690 = vmatpush1.msra.mxu0 0.0
    %1691 = vmatprep.subr.mxu0 0.0
    %1692 = vmatpush1.msra.mxu0 0.0
    %1693 = vmatprep.subr.mxu0 0.0
    %1694 = vmatpush1.msra.mxu0 0.0
    %1695 = vmatprep.subr.mxu0 0.0
    %1696 = vmatpush1.msra.mxu0 0.0
    %1697 = vmatprep.subr.mxu0 0.0
    %1698 = vmatpush1.msra.mxu0 0.0
    %1699 = vmatprep.subr.mxu0 0.0
    %1700 = vmatpush1.msra.mxu0 0.0
    %1701 = vmatprep.subr.mxu0 0.0
    %1702 = vmatpush1.msra.mxu0 0.0
    %1703 = vmatprep.subr.mxu0 0.0
    %1704 = vmatpush1.msra.mxu0 0.0
    %1705 = vmatprep.subr.mxu0 0.0
    %1706 = vmatpush1.msra.mxu0 0.0
    %1707 = vmatprep.subr.mxu0 0.0
    %1708 = vmatpush1.msra.mxu0 0.0
    %1709 = vmatprep.mubr.f32.mxu0 0.0
    %1710 = vmatmul.mubr.f32.gmra.mrb[0].mxu0 %v1621
    %v1711 = vpop.f32.mrb[0].mxu0
    %v1712 = vadd.f32 %v1643, %v1711
    %v1713 = vpop.f32.mrb[0].mxu0
    %1714 = vdwg.mxu0
    %v1715 = vmax.f32 %v1712, 0.0
    %v1716 = vld [vmem:[%s7] sm:$0xff]
    %v1717 = vld [vmem:[%s7 + $0x8] sm:$0xff]
    %v1718 = vld [vmem:[%s7 + $0x10] sm:$0xff]
    %v1719 = vld [vmem:[%s7 + $0x18] sm:$0xff]
    %v1720 = vld [vmem:[%s7 + $0x20] sm:$0xff]
    %v1721 = vld [vmem:[%s7 + $0x28] sm:$0xff]
    %v1722 = vld [vmem:[%s7 + $0x30] sm:$0xff]
    %v1723 = vld [vmem:[%s7 + $0x38] sm:$0xff]
    %v1724 = vld [vmem:[%s7 + $0x40] sm:$0xff]
    %v1725 = vld [vmem:[%s7 + $0x48] sm:$0xff]
    %v1726 = vld [vmem:[%s7 + $0x50] sm:$0xff]
    %v1727 = vld [vmem:[%s7 + $0x58] sm:$0xff]
    %v1728 = vld [vmem:[%s7 + $0x60] sm:$0xff]
    %v1729 = vld [vmem:[%s7 + $0x68] sm:$0xff]
    %v1730 = vld [vmem:[%s7 + $0x70] sm:$0xff]
    %v1731 = vld [vmem:[%s7 + $0x78] sm:$0xff]
    %v1732 = vld [vmem:[%s8] sm:$0x1]
    %v1734 = vlaneseq
    %v1735 = vshrl.u32 %v1734, 7
    %v1736 = vsub.s32 0, %v1735
    %v1737 = vrot.slane %v1732, %v1736
    %1739 = vmatprep.subr.mxu0 0.0
    %1740 = vmatpush1.msra.mxu0 %v1716
    %1741 = vmatprep.subr.mxu0 0.0
    %1742 = vmatpush1.msra.mxu0 %v1717
    %1743 = vmatprep.subr.mxu0 0.0
    %1744 = vmatpush1.msra.mxu0 %v1718
    %1745 = vmatprep.subr.mxu0 0.0
    %1746 = vmatpush1.msra.mxu0 %v1719
    %1747 = vmatprep.subr.mxu0 0.0
    %1748 = vmatpush1.msra.mxu0 %v1720
    %1749 = vmatprep.subr.mxu0 0.0
    %1750 = vmatpush1.msra.mxu0 %v1721
    %1751 = vmatprep.subr.mxu0 0.0
    %1752 = vmatpush1.msra.mxu0 %v1722
    %1753 = vmatprep.subr.mxu0 0.0
    %1754 = vmatpush1.msra.mxu0 %v1723
    %1755 = vmatprep.subr.mxu0 0.0
    %1756 = vmatpush1.msra.mxu0 %v1724
    %1757 = vmatprep.subr.mxu0 0.0
    %1758 = vmatpush1.msra.mxu0 %v1725
    %1759 = vmatprep.subr.mxu0 0.0
    %1760 = vmatpush1.msra.mxu0 %v1726
    %1761 = vmatprep.subr.mxu0 0.0
    %1762 = vmatpush1.msra.mxu0 %v1727
    %1763 = vmatprep.subr.mxu0 0.0
    %1764 = vmatpush1.msra.mxu0 %v1728
    %1765 = vmatprep.subr.mxu0 0.0
    %1766 = vmatpush1.msra.mxu0 %v1729
    %1767 = vmatprep.subr.mxu0 0.0
    %1768 = vmatpush1.msra.mxu0 %v1730
    %1769 = vmatprep.subr.mxu0 0.0
    %1770 = vmatpush1.msra.mxu0 %v1731
    %1771 = vmatprep.subr.mxu0 0.0
    %1772 = vmatpush1.msra.mxu0 0.0
    %1773 = vmatprep.subr.mxu0 0.0
    %1774 = vmatpush1.msra.mxu0 0.0
    %1775 = vmatprep.subr.mxu0 0.0
    %1776 = vmatpush1.msra.mxu0 0.0
    %1777 = vmatprep.subr.mxu0 0.0
    %1778 = vmatpush1.msra.mxu0 0.0
    %1779 = vmatprep.subr.mxu0 0.0
    %1780 = vmatpush1.msra.mxu0 0.0
    %1781 = vmatprep.subr.mxu0 0.0
    %1782 = vmatpush1.msra.mxu0 0.0
    %1783 = vmatprep.subr.mxu0 0.0
    %1784 = vmatpush1.msra.mxu0 0.0
    %1785 = vmatprep.subr.mxu0 0.0
    %1786 = vmatpush1.msra.mxu0 0.0
    %1787 = vmatprep.subr.mxu0 0.0
    %1788 = vmatpush1.msra.mxu0 0.0
    %1789 = vmatprep.subr.mxu0 0.0
    %1790 = vmatpush1.msra.mxu0 0.0
    %1791 = vmatprep.subr.mxu0 0.0
    %1792 = vmatpush1.msra.mxu0 0.0
    %1793 = vmatprep.subr.mxu0 0.0
    %1794 = vmatpush1.msra.mxu0 0.0
    %1795 = vmatprep.subr.mxu0 0.0
    %1796 = vmatpush1.msra.mxu0 0.0
    %1797 = vmatprep.subr.mxu0 0.0
    %1798 = vmatpush1.msra.mxu0 0.0
    %1799 = vmatprep.subr.mxu0 0.0
    %1800 = vmatpush1.msra.mxu0 0.0
    %1801 = vmatprep.subr.mxu0 0.0
    %1802 = vmatpush1.msra.mxu0 0.0
    %1803 = vmatprep.mubr.f32.mxu0 0.0
    %1804 = vmatmul.mubr.f32.gmra.mrb[0].mxu0 %v1715
    %v1805 = vpop.f32.mrb[0].mxu0
    %v1806 = vadd.f32 %v1737, %v1805
    %v1807 = vpop.f32.mrb[0].mxu0
    %1808 = vdwg.mxu0
    %v1809 = vsel %vm1253, %v1806, -inf
    %1810 = vmax.xlane.f32.xlu0 %v1809
    %v1811 = vpop.xlane.xlu0 %1810
    %v1812 = vsub.f32 %v1806, %v1811
    %v1813 = vmul.f32 %v1812, 1.442695
    %v1814 = vpow.pop %v1813
    %v1815 = vsel %vm1253, %v1814, 0.0
    %1816 = vadd.xlane.f32.xlu0 %v1815
    %v1817 = vpop.xlane.xlu0 %1816
    %v1818 = vlog2.pop %v1817
    %v1819 = vmul.f32 %v1818, 0.6931472
    %v1820 = vsub.f32 %v1812, %v1819
    %1821 = vst [vmem:[#allocation2] sm:$0x3] %v1820
    // Predicated region
    $region38: #{conv_model_forward.1} parent=1 // pred_check
      _
    $region39: #{conv_model_forward.1} parent=1 // pred_check_branch
      %1823 = sbr.rel (0) target = $region41
    $region40: #{conv_model_forward.1} parent=1 // pred_region
      %s1825 = ssub.s32 32, 32
      %1826 = vsyncadd [#allocation3], %s1825
      %s1828 = sshll.u32 [#allocation2], 4
      %s1829 = int_to_ptr.vmem [resolvable:$true] %s1828
      %1831 = dma.vmem_to_hbm [thread:$0]  %s1829, 32, %s9, [#allocation3]
    $region41: #{conv_model_forward.1} parent=1 // pred_fallthru
      _
    // Predicated region
    $region42: #{conv_model_forward.1} parent=1 // pred_check
      _
    $region43: #{conv_model_forward.1} parent=1 // pred_check_branch
      %1833 = sbr.rel (0) target = $region45
    $region44: #{conv_model_forward.1} parent=1 // pred_region
      %1834 = dma.done [#allocation3], 32
    $region45: #{conv_model_forward.1} parent=1 // pred_fallthru
      _
    %1835 = vsyncpa [#allocation3], 1

</llo_original>
